<compile_context>
chip_gen: v7x
topology: tpu7x:2x2x1
jax: 0.10.0
libtpu: 0.0.40
codegen_flags: <defaults>
</compile_context>

<pallas_src>
import numpy as np
import jax
import jax.numpy as jnp
from jax import lax
from jax.experimental import pallas as pl
from jax.experimental.pallas import tpu as pltpu


def _make_bilstm_kernel(T, N, E, H):
    """Builds a bidirectional single-layer LSTM kernel for static (T, N, E, H).

    Kernel refs:
      x_ref:   (T*N, E)    time-major rows (row = t*N + n)
      wih_ref: (E, 8H)     [W_ih_fwd^T | W_ih_bwd^T]
      whh_ref: (2H, 8H)    block-diag([W_hh_fwd^T, W_hh_bwd^T])
      b_ref:   (1, 8H)     [b_fwd | b_bwd]  (each = b_ih + b_hh)
      out_ref: (T*N, 2H)   lanes [:H] forward hidden, lanes [H:] backward
      gx_ref:  (T*N, 8H)   VMEM scratch for the precomputed input projection
    """
    G = 4 * H

    def kernel(x_ref, wih_ref, whh_ref, b_ref, out_ref, gx_ref):
        # --- input projection for both directions, one well-shaped MXU matmul,
        #     bias folded in here so the recurrence never touches it ---
        gx_ref[...] = (
            jnp.dot(x_ref[...], wih_ref[...], preferred_element_type=jnp.float32)
            + b_ref[...]
        )

        # recurrent weights hoisted out of the loop (fits easily in vregs)
        whh = whh_ref[...]  # (2H, 8H)

        def lstm_gates(pre, c):
            i = jax.nn.sigmoid(pre[:, 0 * H:1 * H])
            f = jax.nn.sigmoid(pre[:, 1 * H:2 * H])
            g = jnp.tanh(pre[:, 2 * H:3 * H])
            o = jax.nn.sigmoid(pre[:, 3 * H:4 * H])
            c_new = f * c + i * g
            h_new = o * jnp.tanh(c_new)
            return h_new, c_new

        # state carried in registers across the (statically unrolled) loop
        h = jnp.zeros((N, 2 * H), jnp.float32)   # [h_fwd | h_bwd] along lanes
        c_f = jnp.zeros((N, H), jnp.float32)
        c_b = jnp.zeros((N, H), jnp.float32)

        for t in range(T):                        # T is static -> full unroll
            tb = T - 1 - t
            # single fused recurrent matmul for both directions (block-diag W)
            gh = jnp.dot(h, whh, preferred_element_type=jnp.float32)  # (N, 8H)

            pre_f = gx_ref[t * N:(t + 1) * N, 0:G] + gh[:, 0:G]
            pre_b = gx_ref[tb * N:(tb + 1) * N, G:2 * G] + gh[:, G:2 * G]

            h_f, c_f = lstm_gates(pre_f, c_f)
            h_b, c_b = lstm_gates(pre_b, c_b)

            out_ref[t * N:(t + 1) * N, 0:H] = h_f
            out_ref[tb * N:(tb + 1) * N, H:2 * H] = h_b

            h = jnp.concatenate([h_f, h_b], axis=-1)

    return kernel


def contextual_embedding_forward(x, params):
    """x: (N, T, E) float32 -> (N, T, 2H) float32."""
    N, T, E = x.shape
    H = params["whh_f"].shape[0]
    G = 4 * H

    # Fuse per-direction parameters (cheap; folds under jit).
    wih_cat = jnp.concatenate([params["wih_f"], params["wih_b"]], axis=1)  # (E, 8H)
    whh_cat = jnp.zeros((2 * H, 2 * G), jnp.float32)
    whh_cat = whh_cat.at[:H, :G].set(params["whh_f"])
    whh_cat = whh_cat.at[H:, G:].set(params["whh_b"])                      # (2H, 8H)
    b_cat = jnp.concatenate([params["b_f"], params["b_b"]], axis=1)        # (1, 8H)

    # time-major, rows = t*N + n
    x_tm = jnp.transpose(x, (1, 0, 2)).reshape(T * N, E)

    vmem = pl.BlockSpec(memory_space=pltpu.MemorySpace.VMEM)
    out2d = pl.pallas_call(
        _make_bilstm_kernel(T, N, E, H),
        out_shape=jax.ShapeDtypeStruct((T * N, 2 * H), jnp.float32),
        in_specs=[vmem, vmem, vmem, vmem],
        out_specs=vmem,
        scratch_shapes=[pltpu.VMEM((T * N, 2 * G), jnp.float32)],
    )(x_tm, wih_cat, whh_cat, b_cat)

    out = out2d.reshape(T, N, 2 * H)
    return jnp.transpose(out, (1, 0, 2))          # back to batch-first


def init_params(key, emb_dim, hidden):
    """Deterministic PyTorch-style init: U(-1/sqrt(H), 1/sqrt(H))."""
    bound = 1.0 / np.sqrt(hidden)
    keys = jax.random.split(key, 8)

    def u(k, shape):
        return jax.random.uniform(k, shape, jnp.float32, -bound, bound)

    # PyTorch stores weight_ih_l0: (4H, E), weight_hh_l0: (4H, H); store transposed.
    wih_f = u(keys[0], (4 * hidden, emb_dim)).T          # (E, 4H)
    whh_f = u(keys[1], (4 * hidden, hidden)).T           # (H, 4H)
    b_f = (u(keys[2], (4 * hidden,)) + u(keys[3], (4 * hidden,))).reshape(1, -1)
    wih_b = u(keys[4], (4 * hidden, emb_dim)).T
    whh_b = u(keys[5], (4 * hidden, hidden)).T
    b_b = (u(keys[6], (4 * hidden,)) + u(keys[7], (4 * hidden,))).reshape(1, -1)
    return dict(wih_f=wih_f, whh_f=whh_f, b_f=b_f,
                wih_b=wih_b, whh_b=whh_b, b_b=b_b)


def _reference_bilstm(x, params):
    """Plain-JAX reference of the same math (correctness check)."""
    H = params["whh_f"].shape[0]
    xs = jnp.transpose(x, (1, 0, 2))  # (T, N, E)
    N = xs.shape[1]

    def run_dir(xs_dir, wih, whh, b):
        def step(carry, xt):
            h, c = carry
            gates = xt @ wih + h @ whh + b
            i = jax.nn.sigmoid(gates[:, 0 * H:1 * H])
            f = jax.nn.sigmoid(gates[:, 1 * H:2 * H])
            g = jnp.tanh(gates[:, 2 * H:3 * H])
            o = jax.nn.sigmoid(gates[:, 3 * H:4 * H])
            c = f * c + i * g
            h = o * jnp.tanh(c)
            return (h, c), h
        h0 = jnp.zeros((N, H), jnp.float32)
        c0 = jnp.zeros((N, H), jnp.float32)
        _, hs = lax.scan(step, (h0, c0), xs_dir)
        return hs

    hs_f = run_dir(xs, params["wih_f"], params["whh_f"], params["b_f"])
    hs_b = run_dir(xs[::-1], params["wih_b"], params["whh_b"], params["b_b"])[::-1]
    out = jnp.concatenate([hs_f, hs_b], axis=-1)
    return jnp.transpose(out, (1, 0, 2))


if __name__ == "__main__":
    # config: EMBEDDING_DIM=32, LSTM_HIDDEN_DIM=32, LSTM_DROP_RATE (inactive at inference)
    N, T, E, H = 2, 8, 32, 32

    key = jax.random.PRNGKey(0)
    k_x, k_p = jax.random.split(key)
    x = jax.random.normal(k_x, (N, T, E), jnp.float32)
    params = init_params(k_p, E, H)

    out = jax.block_until_ready(contextual_embedding_forward(x, params))
    assert out.shape == (N, T, 2 * H), out.shape

    ref = jax.block_until_ready(_reference_bilstm(x, params))
    np.testing.assert_allclose(np.asarray(out), np.asarray(ref), rtol=1e-3, atol=2e-3)

    print("KERNEL_OK")
</pallas_src>

<mosaic_0001>
module attributes {stable_mosaic.version = 11 : i64} {
  func.func @kernel(%arg0: memref<16x32xf32, #tpu.memory_space<vmem>>, %arg1: memref<32x256xf32, #tpu.memory_space<vmem>>, %arg2: memref<64x256xf32, #tpu.memory_space<vmem>>, %arg3: memref<1x256xf32, #tpu.memory_space<vmem>>, %arg4: memref<16x64xf32, #tpu.memory_space<vmem>>, %arg5: memref<16x256xf32, #tpu.memory_space<vmem>>) attributes {dimension_semantics = [], scalar_prefetch = 0 : i64, scratch_operands = 1 : i64, tpu.core_type = #tpu.core_type<tc>} {
    %c0 = arith.constant 0 : index
    %c0_0 = arith.constant 0 : index
    %0 = vector.load %arg0[%c0, %c0_0] : memref<16x32xf32, #tpu.memory_space<vmem>>, vector<16x32xf32>
    %c0_1 = arith.constant 0 : index
    %c0_2 = arith.constant 0 : index
    %1 = vector.load %arg1[%c0_1, %c0_2] : memref<32x256xf32, #tpu.memory_space<vmem>>, vector<32x256xf32>
    %cst = arith.constant dense<0.000000e+00> : vector<16x256xf32>
    %2 = tpu.matmul %0, %1, %cst {dimension_numbers = #tpu.dot_dimension_numbers<[1], [0], [0], [1], [0, 0, 1, 1], [], []>} : vector<16x32xf32>, vector<32x256xf32>, vector<16x256xf32> -> vector<16x256xf32>
    %c0_3 = arith.constant 0 : index
    %c0_4 = arith.constant 0 : index
    %3 = vector.load %arg3[%c0_3, %c0_4] : memref<1x256xf32, #tpu.memory_space<vmem>>, vector<1x256xf32>
    %4 = vector.broadcast %3 : vector<1x256xf32> to vector<16x256xf32>
    %5 = arith.addf %2, %4 : vector<16x256xf32>
    %c0_5 = arith.constant 0 : index
    %c0_6 = arith.constant 0 : index
    %6 = vector.load %arg5[%c0_5, %c0_6] : memref<16x256xf32, #tpu.memory_space<vmem>>, vector<16x256xf32>
    tpu.vector_store %arg5[%c0_5, %c0_6], %5 {strides = array<i32>} : memref<16x256xf32, #tpu.memory_space<vmem>>, vector<16x256xf32>,
    %c0_7 = arith.constant 0 : index
    %c0_8 = arith.constant 0 : index
    %7 = vector.load %arg2[%c0_7, %c0_8] : memref<64x256xf32, #tpu.memory_space<vmem>>, vector<64x256xf32>
    %cst_9 = arith.constant 0.000000e+00 : f32
    %8 = vector.broadcast %cst_9 : f32 to vector<2x64xf32>
    %cst_10 = arith.constant 0.000000e+00 : f32
    %9 = vector.broadcast %cst_10 : f32 to vector<2x32xf32>
    %cst_11 = arith.constant 0.000000e+00 : f32
    %10 = vector.broadcast %cst_11 : f32 to vector<2x32xf32>
    %cst_12 = arith.constant dense<0.000000e+00> : vector<2x256xf32>
    %11 = tpu.matmul %8, %7, %cst_12 {dimension_numbers = #tpu.dot_dimension_numbers<[1], [0], [0], [1], [0, 0, 1, 1], [], []>} : vector<2x64xf32>, vector<64x256xf32>, vector<2x256xf32> -> vector<2x256xf32>
    %c0_13 = arith.constant 0 : index
    %c0_14 = arith.constant 0 : index
    %12 = vector.load %arg5[%c0_13, %c0_14] : memref<16x256xf32, #tpu.memory_space<vmem>>, vector<2x128xf32>
    %13 = vector.extract_strided_slice %11 {offsets = [0, 0], sizes = [2, 128], strides = [1, 1]} : vector<2x256xf32> to vector<2x128xf32>
    %14 = arith.addf %12, %13 : vector<2x128xf32>
    %c14 = arith.constant 14 : index
    %c128 = arith.constant 128 : index
    %15 = vector.load %arg5[%c14, %c128] : memref<16x256xf32, #tpu.memory_space<vmem>>, vector<2x128xf32>
    %16 = vector.extract_strided_slice %11 {offsets = [0, 128], sizes = [2, 128], strides = [1, 1]} : vector<2x256xf32> to vector<2x128xf32>
    %17 = arith.addf %15, %16 : vector<2x128xf32>
    %18 = vector.extract_strided_slice %14 {offsets = [0, 0], sizes = [2, 32], strides = [1, 1]} : vector<2x128xf32> to vector<2x32xf32>
    %19 = arith.negf %18 : vector<2x32xf32>
    %20 = math.exp %19 : vector<2x32xf32>
    %cst_15 = arith.constant 1.000000e+00 : f32
    %21 = vector.broadcast %cst_15 : f32 to vector<2x32xf32>
    %22 = arith.addf %21, %20 : vector<2x32xf32>
    %23 = arith.divf %21, %22 : vector<2x32xf32>
    %24 = vector.extract_strided_slice %14 {offsets = [0, 32], sizes = [2, 32], strides = [1, 1]} : vector<2x128xf32> to vector<2x32xf32>
    %25 = arith.negf %24 : vector<2x32xf32>
    %26 = math.exp %25 : vector<2x32xf32>
    %cst_16 = arith.constant 1.000000e+00 : f32
    %27 = vector.broadcast %cst_16 : f32 to vector<2x32xf32>
    %28 = arith.addf %27, %26 : vector<2x32xf32>
    %29 = arith.divf %27, %28 : vector<2x32xf32>
    %30 = vector.extract_strided_slice %14 {offsets = [0, 64], sizes = [2, 32], strides = [1, 1]} : vector<2x128xf32> to vector<2x32xf32>
    %31 = math.tanh %30 : vector<2x32xf32>
    %32 = vector.extract_strided_slice %14 {offsets = [0, 96], sizes = [2, 32], strides = [1, 1]} : vector<2x128xf32> to vector<2x32xf32>
    %33 = arith.negf %32 : vector<2x32xf32>
    %34 = math.exp %33 : vector<2x32xf32>
    %cst_17 = arith.constant 1.000000e+00 : f32
    %35 = vector.broadcast %cst_17 : f32 to vector<2x32xf32>
    %36 = arith.addf %35, %34 : vector<2x32xf32>
    %37 = arith.divf %35, %36 : vector<2x32xf32>
    %38 = arith.mulf %29, %9 : vector<2x32xf32>
    %39 = arith.mulf %23, %31 : vector<2x32xf32>
    %40 = arith.addf %38, %39 : vector<2x32xf32>
    %41 = math.tanh %40 : vector<2x32xf32>
    %42 = arith.mulf %37, %41 : vector<2x32xf32>
    %43 = vector.extract_strided_slice %17 {offsets = [0, 0], sizes = [2, 32], strides = [1, 1]} : vector<2x128xf32> to vector<2x32xf32>
    %44 = arith.negf %43 : vector<2x32xf32>
    %45 = math.exp %44 : vector<2x32xf32>
    %cst_18 = arith.constant 1.000000e+00 : f32
    %46 = vector.broadcast %cst_18 : f32 to vector<2x32xf32>
    %47 = arith.addf %46, %45 : vector<2x32xf32>
    %48 = arith.divf %46, %47 : vector<2x32xf32>
    %49 = vector.extract_strided_slice %17 {offsets = [0, 32], sizes = [2, 32], strides = [1, 1]} : vector<2x128xf32> to vector<2x32xf32>
    %50 = arith.negf %49 : vector<2x32xf32>
    %51 = math.exp %50 : vector<2x32xf32>
    %cst_19 = arith.constant 1.000000e+00 : f32
    %52 = vector.broadcast %cst_19 : f32 to vector<2x32xf32>
    %53 = arith.addf %52, %51 : vector<2x32xf32>
    %54 = arith.divf %52, %53 : vector<2x32xf32>
    %55 = vector.extract_strided_slice %17 {offsets = [0, 64], sizes = [2, 32], strides = [1, 1]} : vector<2x128xf32> to vector<2x32xf32>
    %56 = math.tanh %55 : vector<2x32xf32>
    %57 = vector.extract_strided_slice %17 {offsets = [0, 96], sizes = [2, 32], strides = [1, 1]} : vector<2x128xf32> to vector<2x32xf32>
    %58 = arith.negf %57 : vector<2x32xf32>
    %59 = math.exp %58 : vector<2x32xf32>
    %cst_20 = arith.constant 1.000000e+00 : f32
    %60 = vector.broadcast %cst_20 : f32 to vector<2x32xf32>
    %61 = arith.addf %60, %59 : vector<2x32xf32>
    %62 = arith.divf %60, %61 : vector<2x32xf32>
    %63 = arith.mulf %54, %10 : vector<2x32xf32>
    %64 = arith.mulf %48, %56 : vector<2x32xf32>
    %65 = arith.addf %63, %64 : vector<2x32xf32>
    %66 = math.tanh %65 : vector<2x32xf32>
    %67 = arith.mulf %62, %66 : vector<2x32xf32>
    %c0_21 = arith.constant 0 : index
    %c0_22 = arith.constant 0 : index
    %68 = vector.load %arg4[%c0_21, %c0_22] : memref<16x64xf32, #tpu.memory_space<vmem>>, vector<2x32xf32>
    tpu.vector_store %arg4[%c0_21, %c0_22], %42 {strides = array<i32>} : memref<16x64xf32, #tpu.memory_space<vmem>>, vector<2x32xf32>,
    %c14_23 = arith.constant 14 : index
    %c32 = arith.constant 32 : index
    %69 = vector.load %arg4[%c14_23, %c32] : memref<16x64xf32, #tpu.memory_space<vmem>>, vector<2x32xf32>
    tpu.vector_store %arg4[%c14_23, %c32], %67 {strides = array<i32>} : memref<16x64xf32, #tpu.memory_space<vmem>>, vector<2x32xf32>,
    %70 = tpu.concatenate %42, %67 in 1 : vector<2x32xf32>, vector<2x32xf32> -> vector<2x64xf32>
    %cst_24 = arith.constant dense<0.000000e+00> : vector<2x256xf32>
    %71 = tpu.matmul %70, %7, %cst_24 {dimension_numbers = #tpu.dot_dimension_numbers<[1], [0], [0], [1], [0, 0, 1, 1], [], []>} : vector<2x64xf32>, vector<64x256xf32>, vector<2x256xf32> -> vector<2x256xf32>
    %c2 = arith.constant 2 : index
    %c0_25 = arith.constant 0 : index
    %72 = vector.load %arg5[%c2, %c0_25] : memref<16x256xf32, #tpu.memory_space<vmem>>, vector<2x128xf32>
    %73 = vector.extract_strided_slice %71 {offsets = [0, 0], sizes = [2, 128], strides = [1, 1]} : vector<2x256xf32> to vector<2x128xf32>
    %74 = arith.addf %72, %73 : vector<2x128xf32>
    %c12 = arith.constant 12 : index
    %c128_26 = arith.constant 128 : index
    %75 = vector.load %arg5[%c12, %c128_26] : memref<16x256xf32, #tpu.memory_space<vmem>>, vector<2x128xf32>
    %76 = vector.extract_strided_slice %71 {offsets = [0, 128], sizes = [2, 128], strides = [1, 1]} : vector<2x256xf32> to vector<2x128xf32>
    %77 = arith.addf %75, %76 : vector<2x128xf32>
    %78 = vector.extract_strided_slice %74 {offsets = [0, 0], sizes = [2, 32], strides = [1, 1]} : vector<2x128xf32> to vector<2x32xf32>
    %79 = arith.negf %78 : vector<2x32xf32>
    %80 = math.exp %79 : vector<2x32xf32>
    %cst_27 = arith.constant 1.000000e+00 : f32
    %81 = vector.broadcast %cst_27 : f32 to vector<2x32xf32>
    %82 = arith.addf %81, %80 : vector<2x32xf32>
    %83 = arith.divf %81, %82 : vector<2x32xf32>
    %84 = vector.extract_strided_slice %74 {offsets = [0, 32], sizes = [2, 32], strides = [1, 1]} : vector<2x128xf32> to vector<2x32xf32>
    %85 = arith.negf %84 : vector<2x32xf32>
    %86 = math.exp %85 : vector<2x32xf32>
    %cst_28 = arith.constant 1.000000e+00 : f32
    %87 = vector.broadcast %cst_28 : f32 to vector<2x32xf32>
    %88 = arith.addf %87, %86 : vector<2x32xf32>
    %89 = arith.divf %87, %88 : vector<2x32xf32>
    %90 = vector.extract_strided_slice %74 {offsets = [0, 64], sizes = [2, 32], strides = [1, 1]} : vector<2x128xf32> to vector<2x32xf32>
    %91 = math.tanh %90 : vector<2x32xf32>
    %92 = vector.extract_strided_slice %74 {offsets = [0, 96], sizes = [2, 32], strides = [1, 1]} : vector<2x128xf32> to vector<2x32xf32>
    %93 = arith.negf %92 : vector<2x32xf32>
    %94 = math.exp %93 : vector<2x32xf32>
    %cst_29 = arith.constant 1.000000e+00 : f32
    %95 = vector.broadcast %cst_29 : f32 to vector<2x32xf32>
    %96 = arith.addf %95, %94 : vector<2x32xf32>
    %97 = arith.divf %95, %96 : vector<2x32xf32>
    %98 = arith.mulf %89, %40 : vector<2x32xf32>
    %99 = arith.mulf %83, %91 : vector<2x32xf32>
    %100 = arith.addf %98, %99 : vector<2x32xf32>
    %101 = math.tanh %100 : vector<2x32xf32>
    %102 = arith.mulf %97, %101 : vector<2x32xf32>
    %103 = vector.extract_strided_slice %77 {offsets = [0, 0], sizes = [2, 32], strides = [1, 1]} : vector<2x128xf32> to vector<2x32xf32>
    %104 = arith.negf %103 : vector<2x32xf32>
    %105 = math.exp %104 : vector<2x32xf32>
    %cst_30 = arith.constant 1.000000e+00 : f32
    %106 = vector.broadcast %cst_30 : f32 to vector<2x32xf32>
    %107 = arith.addf %106, %105 : vector<2x32xf32>
    %108 = arith.divf %106, %107 : vector<2x32xf32>
    %109 = vector.extract_strided_slice %77 {offsets = [0, 32], sizes = [2, 32], strides = [1, 1]} : vector<2x128xf32> to vector<2x32xf32>
    %110 = arith.negf %109 : vector<2x32xf32>
    %111 = math.exp %110 : vector<2x32xf32>
    %cst_31 = arith.constant 1.000000e+00 : f32
    %112 = vector.broadcast %cst_31 : f32 to vector<2x32xf32>
    %113 = arith.addf %112, %111 : vector<2x32xf32>
    %114 = arith.divf %112, %113 : vector<2x32xf32>
    %115 = vector.extract_strided_slice %77 {offsets = [0, 64], sizes = [2, 32], strides = [1, 1]} : vector<2x128xf32> to vector<2x32xf32>
    %116 = math.tanh %115 : vector<2x32xf32>
    %117 = vector.extract_strided_slice %77 {offsets = [0, 96], sizes = [2, 32], strides = [1, 1]} : vector<2x128xf32> to vector<2x32xf32>
    %118 = arith.negf %117 : vector<2x32xf32>
    %119 = math.exp %118 : vector<2x32xf32>
    %cst_32 = arith.constant 1.000000e+00 : f32
    %120 = vector.broadcast %cst_32 : f32 to vector<2x32xf32>
    %121 = arith.addf %120, %119 : vector<2x32xf32>
    %122 = arith.divf %120, %121 : vector<2x32xf32>
    %123 = arith.mulf %114, %65 : vector<2x32xf32>
    %124 = arith.mulf %108, %116 : vector<2x32xf32>
    %125 = arith.addf %123, %124 : vector<2x32xf32>
    %126 = math.tanh %125 : vector<2x32xf32>
    %127 = arith.mulf %122, %126 : vector<2x32xf32>
    %c2_33 = arith.constant 2 : index
    %c0_34 = arith.constant 0 : index
    %128 = vector.load %arg4[%c2_33, %c0_34] : memref<16x64xf32, #tpu.memory_space<vmem>>, vector<2x32xf32>
    tpu.vector_store %arg4[%c2_33, %c0_34], %102 {strides = array<i32>} : memref<16x64xf32, #tpu.memory_space<vmem>>, vector<2x32xf32>,
    %c12_35 = arith.constant 12 : index
    %c32_36 = arith.constant 32 : index
    %129 = vector.load %arg4[%c12_35, %c32_36] : memref<16x64xf32, #tpu.memory_space<vmem>>, vector<2x32xf32>
    tpu.vector_store %arg4[%c12_35, %c32_36], %127 {strides = array<i32>} : memref<16x64xf32, #tpu.memory_space<vmem>>, vector<2x32xf32>,
    %130 = tpu.concatenate %102, %127 in 1 : vector<2x32xf32>, vector<2x32xf32> -> vector<2x64xf32>
    %cst_37 = arith.constant dense<0.000000e+00> : vector<2x256xf32>
    %131 = tpu.matmul %130, %7, %cst_37 {dimension_numbers = #tpu.dot_dimension_numbers<[1], [0], [0], [1], [0, 0, 1, 1], [], []>} : vector<2x64xf32>, vector<64x256xf32>, vector<2x256xf32> -> vector<2x256xf32>
    %c4 = arith.constant 4 : index
    %c0_38 = arith.constant 0 : index
    %132 = vector.load %arg5[%c4, %c0_38] : memref<16x256xf32, #tpu.memory_space<vmem>>, vector<2x128xf32>
    %133 = vector.extract_strided_slice %131 {offsets = [0, 0], sizes = [2, 128], strides = [1, 1]} : vector<2x256xf32> to vector<2x128xf32>
    %134 = arith.addf %132, %133 : vector<2x128xf32>
    %c10 = arith.constant 10 : index
    %c128_39 = arith.constant 128 : index
    %135 = vector.load %arg5[%c10, %c128_39] : memref<16x256xf32, #tpu.memory_space<vmem>>, vector<2x128xf32>
    %136 = vector.extract_strided_slice %131 {offsets = [0, 128], sizes = [2, 128], strides = [1, 1]} : vector<2x256xf32> to vector<2x128xf32>
    %137 = arith.addf %135, %136 : vector<2x128xf32>
    %138 = vector.extract_strided_slice %134 {offsets = [0, 0], sizes = [2, 32], strides = [1, 1]} : vector<2x128xf32> to vector<2x32xf32>
    %139 = arith.negf %138 : vector<2x32xf32>
    %140 = math.exp %139 : vector<2x32xf32>
    %cst_40 = arith.constant 1.000000e+00 : f32
    %141 = vector.broadcast %cst_40 : f32 to vector<2x32xf32>
    %142 = arith.addf %141, %140 : vector<2x32xf32>
    %143 = arith.divf %141, %142 : vector<2x32xf32>
    %144 = vector.extract_strided_slice %134 {offsets = [0, 32], sizes = [2, 32], strides = [1, 1]} : vector<2x128xf32> to vector<2x32xf32>
    %145 = arith.negf %144 : vector<2x32xf32>
    %146 = math.exp %145 : vector<2x32xf32>
    %cst_41 = arith.constant 1.000000e+00 : f32
    %147 = vector.broadcast %cst_41 : f32 to vector<2x32xf32>
    %148 = arith.addf %147, %146 : vector<2x32xf32>
    %149 = arith.divf %147, %148 : vector<2x32xf32>
    %150 = vector.extract_strided_slice %134 {offsets = [0, 64], sizes = [2, 32], strides = [1, 1]} : vector<2x128xf32> to vector<2x32xf32>
    %151 = math.tanh %150 : vector<2x32xf32>
    %152 = vector.extract_strided_slice %134 {offsets = [0, 96], sizes = [2, 32], strides = [1, 1]} : vector<2x128xf32> to vector<2x32xf32>
    %153 = arith.negf %152 : vector<2x32xf32>
    %154 = math.exp %153 : vector<2x32xf32>
    %cst_42 = arith.constant 1.000000e+00 : f32
    %155 = vector.broadcast %cst_42 : f32 to vector<2x32xf32>
    %156 = arith.addf %155, %154 : vector<2x32xf32>
    %157 = arith.divf %155, %156 : vector<2x32xf32>
    %158 = arith.mulf %149, %100 : vector<2x32xf32>
    %159 = arith.mulf %143, %151 : vector<2x32xf32>
    %160 = arith.addf %158, %159 : vector<2x32xf32>
    %161 = math.tanh %160 : vector<2x32xf32>
    %162 = arith.mulf %157, %161 : vector<2x32xf32>
    %163 = vector.extract_strided_slice %137 {offsets = [0, 0], sizes = [2, 32], strides = [1, 1]} : vector<2x128xf32> to vector<2x32xf32>
    %164 = arith.negf %163 : vector<2x32xf32>
    %165 = math.exp %164 : vector<2x32xf32>
    %cst_43 = arith.constant 1.000000e+00 : f32
    %166 = vector.broadcast %cst_43 : f32 to vector<2x32xf32>
    %167 = arith.addf %166, %165 : vector<2x32xf32>
    %168 = arith.divf %166, %167 : vector<2x32xf32>
    %169 = vector.extract_strided_slice %137 {offsets = [0, 32], sizes = [2, 32], strides = [1, 1]} : vector<2x128xf32> to vector<2x32xf32>
    %170 = arith.negf %169 : vector<2x32xf32>
    %171 = math.exp %170 : vector<2x32xf32>
    %cst_44 = arith.constant 1.000000e+00 : f32
    %172 = vector.broadcast %cst_44 : f32 to vector<2x32xf32>
    %173 = arith.addf %172, %171 : vector<2x32xf32>
    %174 = arith.divf %172, %173 : vector<2x32xf32>
    %175 = vector.extract_strided_slice %137 {offsets = [0, 64], sizes = [2, 32], strides = [1, 1]} : vector<2x128xf32> to vector<2x32xf32>
    %176 = math.tanh %175 : vector<2x32xf32>
    %177 = vector.extract_strided_slice %137 {offsets = [0, 96], sizes = [2, 32], strides = [1, 1]} : vector<2x128xf32> to vector<2x32xf32>
    %178 = arith.negf %177 : vector<2x32xf32>
    %179 = math.exp %178 : vector<2x32xf32>
    %cst_45 = arith.constant 1.000000e+00 : f32
    %180 = vector.broadcast %cst_45 : f32 to vector<2x32xf32>
    %181 = arith.addf %180, %179 : vector<2x32xf32>
    %182 = arith.divf %180, %181 : vector<2x32xf32>
    %183 = arith.mulf %174, %125 : vector<2x32xf32>
    %184 = arith.mulf %168, %176 : vector<2x32xf32>
    %185 = arith.addf %183, %184 : vector<2x32xf32>
    %186 = math.tanh %185 : vector<2x32xf32>
    %187 = arith.mulf %182, %186 : vector<2x32xf32>
    %c4_46 = arith.constant 4 : index
    %c0_47 = arith.constant 0 : index
    %188 = vector.load %arg4[%c4_46, %c0_47] : memref<16x64xf32, #tpu.memory_space<vmem>>, vector<2x32xf32>
    tpu.vector_store %arg4[%c4_46, %c0_47], %162 {strides = array<i32>} : memref<16x64xf32, #tpu.memory_space<vmem>>, vector<2x32xf32>,
    %c10_48 = arith.constant 10 : index
    %c32_49 = arith.constant 32 : index
    %189 = vector.load %arg4[%c10_48, %c32_49] : memref<16x64xf32, #tpu.memory_space<vmem>>, vector<2x32xf32>
    tpu.vector_store %arg4[%c10_48, %c32_49], %187 {strides = array<i32>} : memref<16x64xf32, #tpu.memory_space<vmem>>, vector<2x32xf32>,
    %190 = tpu.concatenate %162, %187 in 1 : vector<2x32xf32>, vector<2x32xf32> -> vector<2x64xf32>
    %cst_50 = arith.constant dense<0.000000e+00> : vector<2x256xf32>
    %191 = tpu.matmul %190, %7, %cst_50 {dimension_numbers = #tpu.dot_dimension_numbers<[1], [0], [0], [1], [0, 0, 1, 1], [], []>} : vector<2x64xf32>, vector<64x256xf32>, vector<2x256xf32> -> vector<2x256xf32>
    %c6 = arith.constant 6 : index
    %c0_51 = arith.constant 0 : index
    %192 = vector.load %arg5[%c6, %c0_51] : memref<16x256xf32, #tpu.memory_space<vmem>>, vector<2x128xf32>
    %193 = vector.extract_strided_slice %191 {offsets = [0, 0], sizes = [2, 128], strides = [1, 1]} : vector<2x256xf32> to vector<2x128xf32>
    %194 = arith.addf %192, %193 : vector<2x128xf32>
    %c8 = arith.constant 8 : index
    %c128_52 = arith.constant 128 : index
    %195 = vector.load %arg5[%c8, %c128_52] : memref<16x256xf32, #tpu.memory_space<vmem>>, vector<2x128xf32>
    %196 = vector.extract_strided_slice %191 {offsets = [0, 128], sizes = [2, 128], strides = [1, 1]} : vector<2x256xf32> to vector<2x128xf32>
    %197 = arith.addf %195, %196 : vector<2x128xf32>
    %198 = vector.extract_strided_slice %194 {offsets = [0, 0], sizes = [2, 32], strides = [1, 1]} : vector<2x128xf32> to vector<2x32xf32>
    %199 = arith.negf %198 : vector<2x32xf32>
    %200 = math.exp %199 : vector<2x32xf32>
    %cst_53 = arith.constant 1.000000e+00 : f32
    %201 = vector.broadcast %cst_53 : f32 to vector<2x32xf32>
    %202 = arith.addf %201, %200 : vector<2x32xf32>
    %203 = arith.divf %201, %202 : vector<2x32xf32>
    %204 = vector.extract_strided_slice %194 {offsets = [0, 32], sizes = [2, 32], strides = [1, 1]} : vector<2x128xf32> to vector<2x32xf32>
    %205 = arith.negf %204 : vector<2x32xf32>
    %206 = math.exp %205 : vector<2x32xf32>
    %cst_54 = arith.constant 1.000000e+00 : f32
    %207 = vector.broadcast %cst_54 : f32 to vector<2x32xf32>
    %208 = arith.addf %207, %206 : vector<2x32xf32>
    %209 = arith.divf %207, %208 : vector<2x32xf32>
    %210 = vector.extract_strided_slice %194 {offsets = [0, 64], sizes = [2, 32], strides = [1, 1]} : vector<2x128xf32> to vector<2x32xf32>
    %211 = math.tanh %210 : vector<2x32xf32>
    %212 = vector.extract_strided_slice %194 {offsets = [0, 96], sizes = [2, 32], strides = [1, 1]} : vector<2x128xf32> to vector<2x32xf32>
    %213 = arith.negf %212 : vector<2x32xf32>
    %214 = math.exp %213 : vector<2x32xf32>
    %cst_55 = arith.constant 1.000000e+00 : f32
    %215 = vector.broadcast %cst_55 : f32 to vector<2x32xf32>
    %216 = arith.addf %215, %214 : vector<2x32xf32>
    %217 = arith.divf %215, %216 : vector<2x32xf32>
    %218 = arith.mulf %209, %160 : vector<2x32xf32>
    %219 = arith.mulf %203, %211 : vector<2x32xf32>
    %220 = arith.addf %218, %219 : vector<2x32xf32>
    %221 = math.tanh %220 : vector<2x32xf32>
    %222 = arith.mulf %217, %221 : vector<2x32xf32>
    %223 = vector.extract_strided_slice %197 {offsets = [0, 0], sizes = [2, 32], strides = [1, 1]} : vector<2x128xf32> to vector<2x32xf32>
    %224 = arith.negf %223 : vector<2x32xf32>
    %225 = math.exp %224 : vector<2x32xf32>
    %cst_56 = arith.constant 1.000000e+00 : f32
    %226 = vector.broadcast %cst_56 : f32 to vector<2x32xf32>
    %227 = arith.addf %226, %225 : vector<2x32xf32>
    %228 = arith.divf %226, %227 : vector<2x32xf32>
    %229 = vector.extract_strided_slice %197 {offsets = [0, 32], sizes = [2, 32], strides = [1, 1]} : vector<2x128xf32> to vector<2x32xf32>
    %230 = arith.negf %229 : vector<2x32xf32>
    %231 = math.exp %230 : vector<2x32xf32>
    %cst_57 = arith.constant 1.000000e+00 : f32
    %232 = vector.broadcast %cst_57 : f32 to vector<2x32xf32>
    %233 = arith.addf %232, %231 : vector<2x32xf32>
    %234 = arith.divf %232, %233 : vector<2x32xf32>
    %235 = vector.extract_strided_slice %197 {offsets = [0, 64], sizes = [2, 32], strides = [1, 1]} : vector<2x128xf32> to vector<2x32xf32>
    %236 = math.tanh %235 : vector<2x32xf32>
    %237 = vector.extract_strided_slice %197 {offsets = [0, 96], sizes = [2, 32], strides = [1, 1]} : vector<2x128xf32> to vector<2x32xf32>
    %238 = arith.negf %237 : vector<2x32xf32>
    %239 = math.exp %238 : vector<2x32xf32>
    %cst_58 = arith.constant 1.000000e+00 : f32
    %240 = vector.broadcast %cst_58 : f32 to vector<2x32xf32>
    %241 = arith.addf %240, %239 : vector<2x32xf32>
    %242 = arith.divf %240, %241 : vector<2x32xf32>
    %243 = arith.mulf %234, %185 : vector<2x32xf32>
    %244 = arith.mulf %228, %236 : vector<2x32xf32>
    %245 = arith.addf %243, %244 : vector<2x32xf32>
    %246 = math.tanh %245 : vector<2x32xf32>
    %247 = arith.mulf %242, %246 : vector<2x32xf32>
    %c6_59 = arith.constant 6 : index
    %c0_60 = arith.constant 0 : index
    %248 = vector.load %arg4[%c6_59, %c0_60] : memref<16x64xf32, #tpu.memory_space<vmem>>, vector<2x32xf32>
    tpu.vector_store %arg4[%c6_59, %c0_60], %222 {strides = array<i32>} : memref<16x64xf32, #tpu.memory_space<vmem>>, vector<2x32xf32>,
    %c8_61 = arith.constant 8 : index
    %c32_62 = arith.constant 32 : index
    %249 = vector.load %arg4[%c8_61, %c32_62] : memref<16x64xf32, #tpu.memory_space<vmem>>, vector<2x32xf32>
    tpu.vector_store %arg4[%c8_61, %c32_62], %247 {strides = array<i32>} : memref<16x64xf32, #tpu.memory_space<vmem>>, vector<2x32xf32>,
    %250 = tpu.concatenate %222, %247 in 1 : vector<2x32xf32>, vector<2x32xf32> -> vector<2x64xf32>
    %cst_63 = arith.constant dense<0.000000e+00> : vector<2x256xf32>
    %251 = tpu.matmul %250, %7, %cst_63 {dimension_numbers = #tpu.dot_dimension_numbers<[1], [0], [0], [1], [0, 0, 1, 1], [], []>} : vector<2x64xf32>, vector<64x256xf32>, vector<2x256xf32> -> vector<2x256xf32>
    %c8_64 = arith.constant 8 : index
    %c0_65 = arith.constant 0 : index
    %252 = vector.load %arg5[%c8_64, %c0_65] : memref<16x256xf32, #tpu.memory_space<vmem>>, vector<2x128xf32>
    %253 = vector.extract_strided_slice %251 {offsets = [0, 0], sizes = [2, 128], strides = [1, 1]} : vector<2x256xf32> to vector<2x128xf32>
    %254 = arith.addf %252, %253 : vector<2x128xf32>
    %c6_66 = arith.constant 6 : index
    %c128_67 = arith.constant 128 : index
    %255 = vector.load %arg5[%c6_66, %c128_67] : memref<16x256xf32, #tpu.memory_space<vmem>>, vector<2x128xf32>
    %256 = vector.extract_strided_slice %251 {offsets = [0, 128], sizes = [2, 128], strides = [1, 1]} : vector<2x256xf32> to vector<2x128xf32>
    %257 = arith.addf %255, %256 : vector<2x128xf32>
    %258 = vector.extract_strided_slice %254 {offsets = [0, 0], sizes = [2, 32], strides = [1, 1]} : vector<2x128xf32> to vector<2x32xf32>
    %259 = arith.negf %258 : vector<2x32xf32>
    %260 = math.exp %259 : vector<2x32xf32>
    %cst_68 = arith.constant 1.000000e+00 : f32
    %261 = vector.broadcast %cst_68 : f32 to vector<2x32xf32>
    %262 = arith.addf %261, %260 : vector<2x32xf32>
    %263 = arith.divf %261, %262 : vector<2x32xf32>
    %264 = vector.extract_strided_slice %254 {offsets = [0, 32], sizes = [2, 32], strides = [1, 1]} : vector<2x128xf32> to vector<2x32xf32>
    %265 = arith.negf %264 : vector<2x32xf32>
    %266 = math.exp %265 : vector<2x32xf32>
    %cst_69 = arith.constant 1.000000e+00 : f32
    %267 = vector.broadcast %cst_69 : f32 to vector<2x32xf32>
    %268 = arith.addf %267, %266 : vector<2x32xf32>
    %269 = arith.divf %267, %268 : vector<2x32xf32>
    %270 = vector.extract_strided_slice %254 {offsets = [0, 64], sizes = [2, 32], strides = [1, 1]} : vector<2x128xf32> to vector<2x32xf32>
    %271 = math.tanh %270 : vector<2x32xf32>
    %272 = vector.extract_strided_slice %254 {offsets = [0, 96], sizes = [2, 32], strides = [1, 1]} : vector<2x128xf32> to vector<2x32xf32>
    %273 = arith.negf %272 : vector<2x32xf32>
    %274 = math.exp %273 : vector<2x32xf32>
    %cst_70 = arith.constant 1.000000e+00 : f32
    %275 = vector.broadcast %cst_70 : f32 to vector<2x32xf32>
    %276 = arith.addf %275, %274 : vector<2x32xf32>
    %277 = arith.divf %275, %276 : vector<2x32xf32>
    %278 = arith.mulf %269, %220 : vector<2x32xf32>
    %279 = arith.mulf %263, %271 : vector<2x32xf32>
    %280 = arith.addf %278, %279 : vector<2x32xf32>
    %281 = math.tanh %280 : vector<2x32xf32>
    %282 = arith.mulf %277, %281 : vector<2x32xf32>
    %283 = vector.extract_strided_slice %257 {offsets = [0, 0], sizes = [2, 32], strides = [1, 1]} : vector<2x128xf32> to vector<2x32xf32>
    %284 = arith.negf %283 : vector<2x32xf32>
    %285 = math.exp %284 : vector<2x32xf32>
    %cst_71 = arith.constant 1.000000e+00 : f32
    %286 = vector.broadcast %cst_71 : f32 to vector<2x32xf32>
    %287 = arith.addf %286, %285 : vector<2x32xf32>
    %288 = arith.divf %286, %287 : vector<2x32xf32>
    %289 = vector.extract_strided_slice %257 {offsets = [0, 32], sizes = [2, 32], strides = [1, 1]} : vector<2x128xf32> to vector<2x32xf32>
    %290 = arith.negf %289 : vector<2x32xf32>
    %291 = math.exp %290 : vector<2x32xf32>
    %cst_72 = arith.constant 1.000000e+00 : f32
    %292 = vector.broadcast %cst_72 : f32 to vector<2x32xf32>
    %293 = arith.addf %292, %291 : vector<2x32xf32>
    %294 = arith.divf %292, %293 : vector<2x32xf32>
    %295 = vector.extract_strided_slice %257 {offsets = [0, 64], sizes = [2, 32], strides = [1, 1]} : vector<2x128xf32> to vector<2x32xf32>
    %296 = math.tanh %295 : vector<2x32xf32>
    %297 = vector.extract_strided_slice %257 {offsets = [0, 96], sizes = [2, 32], strides = [1, 1]} : vector<2x128xf32> to vector<2x32xf32>
    %298 = arith.negf %297 : vector<2x32xf32>
    %299 = math.exp %298 : vector<2x32xf32>
    %cst_73 = arith.constant 1.000000e+00 : f32
    %300 = vector.broadcast %cst_73 : f32 to vector<2x32xf32>
    %301 = arith.addf %300, %299 : vector<2x32xf32>
    %302 = arith.divf %300, %301 : vector<2x32xf32>
    %303 = arith.mulf %294, %245 : vector<2x32xf32>
    %304 = arith.mulf %288, %296 : vector<2x32xf32>
    %305 = arith.addf %303, %304 : vector<2x32xf32>
    %306 = math.tanh %305 : vector<2x32xf32>
    %307 = arith.mulf %302, %306 : vector<2x32xf32>
    %c8_74 = arith.constant 8 : index
    %c0_75 = arith.constant 0 : index
    %308 = vector.load %arg4[%c8_74, %c0_75] : memref<16x64xf32, #tpu.memory_space<vmem>>, vector<2x32xf32>
    tpu.vector_store %arg4[%c8_74, %c0_75], %282 {strides = array<i32>} : memref<16x64xf32, #tpu.memory_space<vmem>>, vector<2x32xf32>,
    %c6_76 = arith.constant 6 : index
    %c32_77 = arith.constant 32 : index
    %309 = vector.load %arg4[%c6_76, %c32_77] : memref<16x64xf32, #tpu.memory_space<vmem>>, vector<2x32xf32>
    tpu.vector_store %arg4[%c6_76, %c32_77], %307 {strides = array<i32>} : memref<16x64xf32, #tpu.memory_space<vmem>>, vector<2x32xf32>,
    %310 = tpu.concatenate %282, %307 in 1 : vector<2x32xf32>, vector<2x32xf32> -> vector<2x64xf32>
    %cst_78 = arith.constant dense<0.000000e+00> : vector<2x256xf32>
    %311 = tpu.matmul %310, %7, %cst_78 {dimension_numbers = #tpu.dot_dimension_numbers<[1], [0], [0], [1], [0, 0, 1, 1], [], []>} : vector<2x64xf32>, vector<64x256xf32>, vector<2x256xf32> -> vector<2x256xf32>
    %c10_79 = arith.constant 10 : index
    %c0_80 = arith.constant 0 : index
    %312 = vector.load %arg5[%c10_79, %c0_80] : memref<16x256xf32, #tpu.memory_space<vmem>>, vector<2x128xf32>
    %313 = vector.extract_strided_slice %311 {offsets = [0, 0], sizes = [2, 128], strides = [1, 1]} : vector<2x256xf32> to vector<2x128xf32>
    %314 = arith.addf %312, %313 : vector<2x128xf32>
    %c4_81 = arith.constant 4 : index
    %c128_82 = arith.constant 128 : index
    %315 = vector.load %arg5[%c4_81, %c128_82] : memref<16x256xf32, #tpu.memory_space<vmem>>, vector<2x128xf32>
    %316 = vector.extract_strided_slice %311 {offsets = [0, 128], sizes = [2, 128], strides = [1, 1]} : vector<2x256xf32> to vector<2x128xf32>
    %317 = arith.addf %315, %316 : vector<2x128xf32>
    %318 = vector.extract_strided_slice %314 {offsets = [0, 0], sizes = [2, 32], strides = [1, 1]} : vector<2x128xf32> to vector<2x32xf32>
    %319 = arith.negf %318 : vector<2x32xf32>
    %320 = math.exp %319 : vector<2x32xf32>
    %cst_83 = arith.constant 1.000000e+00 : f32
    %321 = vector.broadcast %cst_83 : f32 to vector<2x32xf32>
    %322 = arith.addf %321, %320 : vector<2x32xf32>
    %323 = arith.divf %321, %322 : vector<2x32xf32>
    %324 = vector.extract_strided_slice %314 {offsets = [0, 32], sizes = [2, 32], strides = [1, 1]} : vector<2x128xf32> to vector<2x32xf32>
    %325 = arith.negf %324 : vector<2x32xf32>
    %326 = math.exp %325 : vector<2x32xf32>
    %cst_84 = arith.constant 1.000000e+00 : f32
    %327 = vector.broadcast %cst_84 : f32 to vector<2x32xf32>
    %328 = arith.addf %327, %326 : vector<2x32xf32>
    %329 = arith.divf %327, %328 : vector<2x32xf32>
    %330 = vector.extract_strided_slice %314 {offsets = [0, 64], sizes = [2, 32], strides = [1, 1]} : vector<2x128xf32> to vector<2x32xf32>
    %331 = math.tanh %330 : vector<2x32xf32>
    %332 = vector.extract_strided_slice %314 {offsets = [0, 96], sizes = [2, 32], strides = [1, 1]} : vector<2x128xf32> to vector<2x32xf32>
    %333 = arith.negf %332 : vector<2x32xf32>
    %334 = math.exp %333 : vector<2x32xf32>
    %cst_85 = arith.constant 1.000000e+00 : f32
    %335 = vector.broadcast %cst_85 : f32 to vector<2x32xf32>
    %336 = arith.addf %335, %334 : vector<2x32xf32>
    %337 = arith.divf %335, %336 : vector<2x32xf32>
    %338 = arith.mulf %329, %280 : vector<2x32xf32>
    %339 = arith.mulf %323, %331 : vector<2x32xf32>
    %340 = arith.addf %338, %339 : vector<2x32xf32>
    %341 = math.tanh %340 : vector<2x32xf32>
    %342 = arith.mulf %337, %341 : vector<2x32xf32>
    %343 = vector.extract_strided_slice %317 {offsets = [0, 0], sizes = [2, 32], strides = [1, 1]} : vector<2x128xf32> to vector<2x32xf32>
    %344 = arith.negf %343 : vector<2x32xf32>
    %345 = math.exp %344 : vector<2x32xf32>
    %cst_86 = arith.constant 1.000000e+00 : f32
    %346 = vector.broadcast %cst_86 : f32 to vector<2x32xf32>
    %347 = arith.addf %346, %345 : vector<2x32xf32>
    %348 = arith.divf %346, %347 : vector<2x32xf32>
    %349 = vector.extract_strided_slice %317 {offsets = [0, 32], sizes = [2, 32], strides = [1, 1]} : vector<2x128xf32> to vector<2x32xf32>
    %350 = arith.negf %349 : vector<2x32xf32>
    %351 = math.exp %350 : vector<2x32xf32>
    %cst_87 = arith.constant 1.000000e+00 : f32
    %352 = vector.broadcast %cst_87 : f32 to vector<2x32xf32>
    %353 = arith.addf %352, %351 : vector<2x32xf32>
    %354 = arith.divf %352, %353 : vector<2x32xf32>
    %355 = vector.extract_strided_slice %317 {offsets = [0, 64], sizes = [2, 32], strides = [1, 1]} : vector<2x128xf32> to vector<2x32xf32>
    %356 = math.tanh %355 : vector<2x32xf32>
    %357 = vector.extract_strided_slice %317 {offsets = [0, 96], sizes = [2, 32], strides = [1, 1]} : vector<2x128xf32> to vector<2x32xf32>
    %358 = arith.negf %357 : vector<2x32xf32>
    %359 = math.exp %358 : vector<2x32xf32>
    %cst_88 = arith.constant 1.000000e+00 : f32
    %360 = vector.broadcast %cst_88 : f32 to vector<2x32xf32>
    %361 = arith.addf %360, %359 : vector<2x32xf32>
    %362 = arith.divf %360, %361 : vector<2x32xf32>
    %363 = arith.mulf %354, %305 : vector<2x32xf32>
    %364 = arith.mulf %348, %356 : vector<2x32xf32>
    %365 = arith.addf %363, %364 : vector<2x32xf32>
    %366 = math.tanh %365 : vector<2x32xf32>
    %367 = arith.mulf %362, %366 : vector<2x32xf32>
    %c10_89 = arith.constant 10 : index
    %c0_90 = arith.constant 0 : index
    %368 = vector.load %arg4[%c10_89, %c0_90] : memref<16x64xf32, #tpu.memory_space<vmem>>, vector<2x32xf32>
    tpu.vector_store %arg4[%c10_89, %c0_90], %342 {strides = array<i32>} : memref<16x64xf32, #tpu.memory_space<vmem>>, vector<2x32xf32>,
    %c4_91 = arith.constant 4 : index
    %c32_92 = arith.constant 32 : index
    %369 = vector.load %arg4[%c4_91, %c32_92] : memref<16x64xf32, #tpu.memory_space<vmem>>, vector<2x32xf32>
    tpu.vector_store %arg4[%c4_91, %c32_92], %367 {strides = array<i32>} : memref<16x64xf32, #tpu.memory_space<vmem>>, vector<2x32xf32>,
    %370 = tpu.concatenate %342, %367 in 1 : vector<2x32xf32>, vector<2x32xf32> -> vector<2x64xf32>
    %cst_93 = arith.constant dense<0.000000e+00> : vector<2x256xf32>
    %371 = tpu.matmul %370, %7, %cst_93 {dimension_numbers = #tpu.dot_dimension_numbers<[1], [0], [0], [1], [0, 0, 1, 1], [], []>} : vector<2x64xf32>, vector<64x256xf32>, vector<2x256xf32> -> vector<2x256xf32>
    %c12_94 = arith.constant 12 : index
    %c0_95 = arith.constant 0 : index
    %372 = vector.load %arg5[%c12_94, %c0_95] : memref<16x256xf32, #tpu.memory_space<vmem>>, vector<2x128xf32>
    %373 = vector.extract_strided_slice %371 {offsets = [0, 0], sizes = [2, 128], strides = [1, 1]} : vector<2x256xf32> to vector<2x128xf32>
    %374 = arith.addf %372, %373 : vector<2x128xf32>
    %c2_96 = arith.constant 2 : index
    %c128_97 = arith.constant 128 : index
    %375 = vector.load %arg5[%c2_96, %c128_97] : memref<16x256xf32, #tpu.memory_space<vmem>>, vector<2x128xf32>
    %376 = vector.extract_strided_slice %371 {offsets = [0, 128], sizes = [2, 128], strides = [1, 1]} : vector<2x256xf32> to vector<2x128xf32>
    %377 = arith.addf %375, %376 : vector<2x128xf32>
    %378 = vector.extract_strided_slice %374 {offsets = [0, 0], sizes = [2, 32], strides = [1, 1]} : vector<2x128xf32> to vector<2x32xf32>
    %379 = arith.negf %378 : vector<2x32xf32>
    %380 = math.exp %379 : vector<2x32xf32>
    %cst_98 = arith.constant 1.000000e+00 : f32
    %381 = vector.broadcast %cst_98 : f32 to vector<2x32xf32>
    %382 = arith.addf %381, %380 : vector<2x32xf32>
    %383 = arith.divf %381, %382 : vector<2x32xf32>
    %384 = vector.extract_strided_slice %374 {offsets = [0, 32], sizes = [2, 32], strides = [1, 1]} : vector<2x128xf32> to vector<2x32xf32>
    %385 = arith.negf %384 : vector<2x32xf32>
    %386 = math.exp %385 : vector<2x32xf32>
    %cst_99 = arith.constant 1.000000e+00 : f32
    %387 = vector.broadcast %cst_99 : f32 to vector<2x32xf32>
    %388 = arith.addf %387, %386 : vector<2x32xf32>
    %389 = arith.divf %387, %388 : vector<2x32xf32>
    %390 = vector.extract_strided_slice %374 {offsets = [0, 64], sizes = [2, 32], strides = [1, 1]} : vector<2x128xf32> to vector<2x32xf32>
    %391 = math.tanh %390 : vector<2x32xf32>
    %392 = vector.extract_strided_slice %374 {offsets = [0, 96], sizes = [2, 32], strides = [1, 1]} : vector<2x128xf32> to vector<2x32xf32>
    %393 = arith.negf %392 : vector<2x32xf32>
    %394 = math.exp %393 : vector<2x32xf32>
    %cst_100 = arith.constant 1.000000e+00 : f32
    %395 = vector.broadcast %cst_100 : f32 to vector<2x32xf32>
    %396 = arith.addf %395, %394 : vector<2x32xf32>
    %397 = arith.divf %395, %396 : vector<2x32xf32>
    %398 = arith.mulf %389, %340 : vector<2x32xf32>
    %399 = arith.mulf %383, %391 : vector<2x32xf32>
    %400 = arith.addf %398, %399 : vector<2x32xf32>
    %401 = math.tanh %400 : vector<2x32xf32>
    %402 = arith.mulf %397, %401 : vector<2x32xf32>
    %403 = vector.extract_strided_slice %377 {offsets = [0, 0], sizes = [2, 32], strides = [1, 1]} : vector<2x128xf32> to vector<2x32xf32>
    %404 = arith.negf %403 : vector<2x32xf32>
    %405 = math.exp %404 : vector<2x32xf32>
    %cst_101 = arith.constant 1.000000e+00 : f32
    %406 = vector.broadcast %cst_101 : f32 to vector<2x32xf32>
    %407 = arith.addf %406, %405 : vector<2x32xf32>
    %408 = arith.divf %406, %407 : vector<2x32xf32>
    %409 = vector.extract_strided_slice %377 {offsets = [0, 32], sizes = [2, 32], strides = [1, 1]} : vector<2x128xf32> to vector<2x32xf32>
    %410 = arith.negf %409 : vector<2x32xf32>
    %411 = math.exp %410 : vector<2x32xf32>
    %cst_102 = arith.constant 1.000000e+00 : f32
    %412 = vector.broadcast %cst_102 : f32 to vector<2x32xf32>
    %413 = arith.addf %412, %411 : vector<2x32xf32>
    %414 = arith.divf %412, %413 : vector<2x32xf32>
    %415 = vector.extract_strided_slice %377 {offsets = [0, 64], sizes = [2, 32], strides = [1, 1]} : vector<2x128xf32> to vector<2x32xf32>
    %416 = math.tanh %415 : vector<2x32xf32>
    %417 = vector.extract_strided_slice %377 {offsets = [0, 96], sizes = [2, 32], strides = [1, 1]} : vector<2x128xf32> to vector<2x32xf32>
    %418 = arith.negf %417 : vector<2x32xf32>
    %419 = math.exp %418 : vector<2x32xf32>
    %cst_103 = arith.constant 1.000000e+00 : f32
    %420 = vector.broadcast %cst_103 : f32 to vector<2x32xf32>
    %421 = arith.addf %420, %419 : vector<2x32xf32>
    %422 = arith.divf %420, %421 : vector<2x32xf32>
    %423 = arith.mulf %414, %365 : vector<2x32xf32>
    %424 = arith.mulf %408, %416 : vector<2x32xf32>
    %425 = arith.addf %423, %424 : vector<2x32xf32>
    %426 = math.tanh %425 : vector<2x32xf32>
    %427 = arith.mulf %422, %426 : vector<2x32xf32>
    %c12_104 = arith.constant 12 : index
    %c0_105 = arith.constant 0 : index
    %428 = vector.load %arg4[%c12_104, %c0_105] : memref<16x64xf32, #tpu.memory_space<vmem>>, vector<2x32xf32>
    tpu.vector_store %arg4[%c12_104, %c0_105], %402 {strides = array<i32>} : memref<16x64xf32, #tpu.memory_space<vmem>>, vector<2x32xf32>,
    %c2_106 = arith.constant 2 : index
    %c32_107 = arith.constant 32 : index
    %429 = vector.load %arg4[%c2_106, %c32_107] : memref<16x64xf32, #tpu.memory_space<vmem>>, vector<2x32xf32>
    tpu.vector_store %arg4[%c2_106, %c32_107], %427 {strides = array<i32>} : memref<16x64xf32, #tpu.memory_space<vmem>>, vector<2x32xf32>,
    %430 = tpu.concatenate %402, %427 in 1 : vector<2x32xf32>, vector<2x32xf32> -> vector<2x64xf32>
    %cst_108 = arith.constant dense<0.000000e+00> : vector<2x256xf32>
    %431 = tpu.matmul %430, %7, %cst_108 {dimension_numbers = #tpu.dot_dimension_numbers<[1], [0], [0], [1], [0, 0, 1, 1], [], []>} : vector<2x64xf32>, vector<64x256xf32>, vector<2x256xf32> -> vector<2x256xf32>
    %c14_109 = arith.constant 14 : index
    %c0_110 = arith.constant 0 : index
    %432 = vector.load %arg5[%c14_109, %c0_110] : memref<16x256xf32, #tpu.memory_space<vmem>>, vector<2x128xf32>
    %433 = vector.extract_strided_slice %431 {offsets = [0, 0], sizes = [2, 128], strides = [1, 1]} : vector<2x256xf32> to vector<2x128xf32>
    %434 = arith.addf %432, %433 : vector<2x128xf32>
    %c0_111 = arith.constant 0 : index
    %c128_112 = arith.constant 128 : index
    %435 = vector.load %arg5[%c0_111, %c128_112] : memref<16x256xf32, #tpu.memory_space<vmem>>, vector<2x128xf32>
    %436 = vector.extract_strided_slice %431 {offsets = [0, 128], sizes = [2, 128], strides = [1, 1]} : vector<2x256xf32> to vector<2x128xf32>
    %437 = arith.addf %435, %436 : vector<2x128xf32>
    %438 = vector.extract_strided_slice %434 {offsets = [0, 0], sizes = [2, 32], strides = [1, 1]} : vector<2x128xf32> to vector<2x32xf32>
    %439 = arith.negf %438 : vector<2x32xf32>
    %440 = math.exp %439 : vector<2x32xf32>
    %cst_113 = arith.constant 1.000000e+00 : f32
    %441 = vector.broadcast %cst_113 : f32 to vector<2x32xf32>
    %442 = arith.addf %441, %440 : vector<2x32xf32>
    %443 = arith.divf %441, %442 : vector<2x32xf32>
    %444 = vector.extract_strided_slice %434 {offsets = [0, 32], sizes = [2, 32], strides = [1, 1]} : vector<2x128xf32> to vector<2x32xf32>
    %445 = arith.negf %444 : vector<2x32xf32>
    %446 = math.exp %445 : vector<2x32xf32>
    %cst_114 = arith.constant 1.000000e+00 : f32
    %447 = vector.broadcast %cst_114 : f32 to vector<2x32xf32>
    %448 = arith.addf %447, %446 : vector<2x32xf32>
    %449 = arith.divf %447, %448 : vector<2x32xf32>
    %450 = vector.extract_strided_slice %434 {offsets = [0, 64], sizes = [2, 32], strides = [1, 1]} : vector<2x128xf32> to vector<2x32xf32>
    %451 = math.tanh %450 : vector<2x32xf32>
    %452 = vector.extract_strided_slice %434 {offsets = [0, 96], sizes = [2, 32], strides = [1, 1]} : vector<2x128xf32> to vector<2x32xf32>
    %453 = arith.negf %452 : vector<2x32xf32>
    %454 = math.exp %453 : vector<2x32xf32>
    %cst_115 = arith.constant 1.000000e+00 : f32
    %455 = vector.broadcast %cst_115 : f32 to vector<2x32xf32>
    %456 = arith.addf %455, %454 : vector<2x32xf32>
    %457 = arith.divf %455, %456 : vector<2x32xf32>
    %458 = arith.mulf %449, %400 : vector<2x32xf32>
    %459 = arith.mulf %443, %451 : vector<2x32xf32>
    %460 = arith.addf %458, %459 : vector<2x32xf32>
    %461 = math.tanh %460 : vector<2x32xf32>
    %462 = arith.mulf %457, %461 : vector<2x32xf32>
    %463 = vector.extract_strided_slice %437 {offsets = [0, 0], sizes = [2, 32], strides = [1, 1]} : vector<2x128xf32> to vector<2x32xf32>
    %464 = arith.negf %463 : vector<2x32xf32>
    %465 = math.exp %464 : vector<2x32xf32>
    %cst_116 = arith.constant 1.000000e+00 : f32
    %466 = vector.broadcast %cst_116 : f32 to vector<2x32xf32>
    %467 = arith.addf %466, %465 : vector<2x32xf32>
    %468 = arith.divf %466, %467 : vector<2x32xf32>
    %469 = vector.extract_strided_slice %437 {offsets = [0, 32], sizes = [2, 32], strides = [1, 1]} : vector<2x128xf32> to vector<2x32xf32>
    %470 = arith.negf %469 : vector<2x32xf32>
    %471 = math.exp %470 : vector<2x32xf32>
    %cst_117 = arith.constant 1.000000e+00 : f32
    %472 = vector.broadcast %cst_117 : f32 to vector<2x32xf32>
    %473 = arith.addf %472, %471 : vector<2x32xf32>
    %474 = arith.divf %472, %473 : vector<2x32xf32>
    %475 = vector.extract_strided_slice %437 {offsets = [0, 64], sizes = [2, 32], strides = [1, 1]} : vector<2x128xf32> to vector<2x32xf32>
    %476 = math.tanh %475 : vector<2x32xf32>
    %477 = vector.extract_strided_slice %437 {offsets = [0, 96], sizes = [2, 32], strides = [1, 1]} : vector<2x128xf32> to vector<2x32xf32>
    %478 = arith.negf %477 : vector<2x32xf32>
    %479 = math.exp %478 : vector<2x32xf32>
    %cst_118 = arith.constant 1.000000e+00 : f32
    %480 = vector.broadcast %cst_118 : f32 to vector<2x32xf32>
    %481 = arith.addf %480, %479 : vector<2x32xf32>
    %482 = arith.divf %480, %481 : vector<2x32xf32>
    %483 = arith.mulf %474, %425 : vector<2x32xf32>
    %484 = arith.mulf %468, %476 : vector<2x32xf32>
    %485 = arith.addf %483, %484 : vector<2x32xf32>
    %486 = math.tanh %485 : vector<2x32xf32>
    %487 = arith.mulf %482, %486 : vector<2x32xf32>
    %c14_119 = arith.constant 14 : index
    %c0_120 = arith.constant 0 : index
    %488 = vector.load %arg4[%c14_119, %c0_120] : memref<16x64xf32, #tpu.memory_space<vmem>>, vector<2x32xf32>
    tpu.vector_store %arg4[%c14_119, %c0_120], %462 {strides = array<i32>} : memref<16x64xf32, #tpu.memory_space<vmem>>, vector<2x32xf32>,
    %c0_121 = arith.constant 0 : index
    %c32_122 = arith.constant 32 : index
    %489 = vector.load %arg4[%c0_121, %c32_122] : memref<16x64xf32, #tpu.memory_space<vmem>>, vector<2x32xf32>
    tpu.vector_store %arg4[%c0_121, %c32_122], %487 {strides = array<i32>} : memref<16x64xf32, #tpu.memory_space<vmem>>, vector<2x32xf32>,
    return
  }
}

</mosaic_0001>

<llo_original>
// kernel: tpu_custom_call.1
$region0: #{tpu_custom_call.1}
  #allocation0 [shape = 'u32[]', space=smem, size = 0x4, offset = 0x4, fixed_abs, tag = 'smem constant byte address 0x4 - core index']
  #allocation1 [shape = 'u32[144,128]{1,0:T(1,128)}', space=vmem, size = 0x12000, scoped, tag = 'internal scratch']
  #allocation2 [shape = 'f32[16,256]{1,0:T(8,128)}', space=vmem, size = 0x4000, scoped, tag = 'scratch operand']
  %s0 = inlined_call_operand.hbm [shape: f32[16,32], index: 0, kind: input, shape index: {}]
  %s1 = inlined_call_operand.hbm [shape: f32[32,256], index: 1, kind: input, shape index: {}]
  %s2 = inlined_call_operand.hbm [shape: f32[64,256], index: 2, kind: input, shape index: {}]
  %s3 = inlined_call_operand.vmem [shape: f32[1,256], index: 3, kind: input, shape index: {}]
  %s4 = inlined_call_operand.hbm [shape: f32[16,64], index: 4, kind: output, shape index: {}]
  %s5 = sld [smem:[#allocation0]]
  $region38: #{tpu_custom_call.1} parent=0
    _
  %s7 = ssub.s32 1, %s5
  %s8 = scalar_select 0, %s7, %s5
  $region1: #{tpu_custom_call.1} parent=0
    #allocation3 [shape = 'u8[8192]{0}', space=vmem, size = 0x2000, scoped, tag = 'input window, operand 0, single buffered']
    #allocation4 [shape = 's32[1]{0}', space=sflag, size = 0x4, scoped, tag = 'scoped memory for tpu_custom_call.1']
    #allocation5 [shape = 's32[1]{0}', space=sflag, size = 0x4, scoped, tag = 'scoped memory for tpu_custom_call.1']
    #allocation6 [shape = 'u8[32768]{0}', space=vmem, size = 0x8000, scoped, tag = 'input window, operand 1, single buffered']
    #allocation7 [shape = 's32[1]{0}', space=sflag, size = 0x4, scoped, tag = 'scoped memory for tpu_custom_call.1']
    #allocation8 [shape = 'u8[65536]{0}', space=vmem, size = 0x10000, scoped, tag = 'input window, operand 2, single buffered']
    #allocation9 [shape = 'u8[8192]{0}', space=vmem, size = 0x2000, scoped, tag = 'output window, operand 0, single buffered']
    %9 = vsyncpa [#allocation4], 0
    %10 = vsyncpa [#allocation7], 0
    %11 = vsyncpa [#allocation5], 0
    // Predicated region
    $region2: #{tpu_custom_call.1} parent=1 // pred_check
      _
    $region3: #{tpu_custom_call.1} parent=1 // pred_check_branch
      %13 = sbr.rel (0) target = $region5
    $region4: #{tpu_custom_call.1} parent=1 // pred_region
      %s15 = ssub.s32 256, 256
      %16 = vsyncadd [#allocation4], %s15
      %s17 = sshll.u32 [#allocation3], 4
      %s18 = int_to_ptr.vmem [resolvable:$true] %s17
      %23 = dma.hbm_to_vmem [thread:$0]  %s0, 256, %s18, [#allocation4], 128, 128, 8
    $region5: #{tpu_custom_call.1} parent=1 // pred_fallthru
      _
    // Predicated region
    $region6: #{tpu_custom_call.1} parent=1 // pred_check
      _
    $region7: #{tpu_custom_call.1} parent=1 // pred_check_branch
      %25 = sbr.rel (0) target = $region9
    $region8: #{tpu_custom_call.1} parent=1 // pred_region
      %s27 = ssub.s32 1024, 1024
      %28 = vsyncadd [#allocation7], %s27
      %s29 = sshll.u32 [#allocation6], 4
      %s30 = int_to_ptr.vmem [resolvable:$true] %s29
      %35 = dma.hbm_to_vmem [thread:$0]  %s1, 1024, %s30, [#allocation7], 256, 256, 16
    $region9: #{tpu_custom_call.1} parent=1 // pred_fallthru
      _
    // Predicated region
    $region10: #{tpu_custom_call.1} parent=1 // pred_check
      _
    $region11: #{tpu_custom_call.1} parent=1 // pred_check_branch
      %37 = sbr.rel (0) target = $region13
    $region12: #{tpu_custom_call.1} parent=1 // pred_region
      %s39 = ssub.s32 2048, 2048
      %40 = vsyncadd [#allocation7], %s39
      %s41 = sshll.u32 [#allocation8], 4
      %s42 = int_to_ptr.vmem [resolvable:$true] %s41
      %47 = dma.hbm_to_vmem [thread:$0]  %s2, 2048, %s42, [#allocation7], 256, 256, 16
    $region13: #{tpu_custom_call.1} parent=1 // pred_fallthru
      _
    // Predicated region
    $region14: #{tpu_custom_call.1} parent=1 // pred_check
      _
    $region15: #{tpu_custom_call.1} parent=1 // pred_check_branch
      %49 = sbr.rel (0) target = $region17
    $region16: #{tpu_custom_call.1} parent=1 // pred_region
      _
    $region17: #{tpu_custom_call.1} parent=1 // pred_fallthru
      _
    // Predicated region
    $region18: #{tpu_custom_call.1} parent=1 // pred_check
      _
    $region19: #{tpu_custom_call.1} parent=1 // pred_check_branch
      %51 = sbr.rel (0) target = $region21
    $region20: #{tpu_custom_call.1} parent=1 // pred_region
      %52 = dma.done [#allocation4], 256
    $region21: #{tpu_custom_call.1} parent=1 // pred_fallthru
      _
    // Predicated region
    $region22: #{tpu_custom_call.1} parent=1 // pred_check
      _
    $region23: #{tpu_custom_call.1} parent=1 // pred_check_branch
      %54 = sbr.rel (0) target = $region25
    $region24: #{tpu_custom_call.1} parent=1 // pred_region
      %55 = dma.done [#allocation7], 1024
    $region25: #{tpu_custom_call.1} parent=1 // pred_fallthru
      _
    // Predicated region
    $region26: #{tpu_custom_call.1} parent=1 // pred_check
      _
    $region27: #{tpu_custom_call.1} parent=1 // pred_check_branch
      %57 = sbr.rel (0) target = $region29
    $region28: #{tpu_custom_call.1} parent=1 // pred_region
      %58 = dma.done [#allocation7], 2048
    $region29: #{tpu_custom_call.1} parent=1 // pred_fallthru
      _
    %v59 = vld [vmem:[#allocation3] sm:$0xff]
    %v60 = vld [vmem:[#allocation3 + $0x8] sm:$0xff]
    %v61 = vld [vmem:[#allocation6] sm:$0xff]
    %v62 = vld [vmem:[#allocation6 + $0x8] sm:$0xff]
    %v63 = vld [vmem:[#allocation6 + $0x10] sm:$0xff]
    %v64 = vld [vmem:[#allocation6 + $0x18] sm:$0xff]
    %v65 = vld [vmem:[#allocation6 + $0x20] sm:$0xff]
    %v66 = vld [vmem:[#allocation6 + $0x28] sm:$0xff]
    %v67 = vld [vmem:[#allocation6 + $0x30] sm:$0xff]
    %v68 = vld [vmem:[#allocation6 + $0x38] sm:$0xff]
    %v69 = vld [vmem:[%s3] sm:$0x3]
    %v71 = vlaneseq
    %v72 = vshrl.u32 %v71, 7
    %v73 = vsub.s32 0, %v72
    %v74 = vrot.slane %v69, %v73
    %v75 = vlaneseq
    %v76 = vshrl.u32 %v75, 7
    %v77 = vsub.s32 1, %v76
    %v78 = vrot.slane %v69, %v77
    %vm81 = vcmask 261120
    %v83 = vsel %vm81, %v59, 0
    %v86 = vsel %vm81, %v60, 0
    %88 = vmatprep.subr.mxu0 %v62
    %89 = vmatpush1.msra.mxu0 %v61
    %90 = vmatprep.subr.mxu0 %v64
    %91 = vmatpush1.msra.mxu0 %v63
    %92 = vmatprep.subr.mxu0 %v66
    %93 = vmatpush1.msra.mxu0 %v65
    %94 = vmatprep.subr.mxu0 %v68
    %95 = vmatpush1.msra.mxu0 %v67
    %96 = vmatprep.subr.mxu0 0.0
    %97 = vmatpush1.msra.mxu0 0.0
    %98 = vmatprep.subr.mxu0 0.0
    %99 = vmatpush1.msra.mxu0 0.0
    %100 = vmatprep.subr.mxu0 0.0
    %101 = vmatpush1.msra.mxu0 0.0
    %102 = vmatprep.subr.mxu0 0.0
    %103 = vmatpush1.msra.mxu0 0.0
    %104 = vmatprep.subr.mxu0 0.0
    %105 = vmatpush1.msra.mxu0 0.0
    %106 = vmatprep.subr.mxu0 0.0
    %107 = vmatpush1.msra.mxu0 0.0
    %108 = vmatprep.subr.mxu0 0.0
    %109 = vmatpush1.msra.mxu0 0.0
    %110 = vmatprep.subr.mxu0 0.0
    %111 = vmatpush1.msra.mxu0 0.0
    %112 = vmatprep.subr.mxu0 0.0
    %113 = vmatpush1.msra.mxu0 0.0
    %114 = vmatprep.subr.mxu0 0.0
    %115 = vmatpush1.msra.mxu0 0.0
    %116 = vmatprep.subr.mxu0 0.0
    %117 = vmatpush1.msra.mxu0 0.0
    %118 = vmatprep.subr.mxu0 0.0
    %119 = vmatpush1.msra.mxu0 0.0
    %120 = vmatprep.subr.mxu0 0.0
    %121 = vmatpush1.msra.mxu0 0.0
    %122 = vmatprep.subr.mxu0 0.0
    %123 = vmatpush1.msra.mxu0 0.0
    %124 = vmatprep.subr.mxu0 0.0
    %125 = vmatpush1.msra.mxu0 0.0
    %126 = vmatprep.subr.mxu0 0.0
    %127 = vmatpush1.msra.mxu0 0.0
    %128 = vmatprep.subr.mxu0 0.0
    %129 = vmatpush1.msra.mxu0 0.0
    %130 = vmatprep.subr.mxu0 0.0
    %131 = vmatpush1.msra.mxu0 0.0
    %132 = vmatprep.subr.mxu0 0.0
    %133 = vmatpush1.msra.mxu0 0.0
    %134 = vmatprep.subr.mxu0 0.0
    %135 = vmatpush1.msra.mxu0 0.0
    %136 = vmatprep.subr.mxu0 0.0
    %137 = vmatpush1.msra.mxu0 0.0
    %138 = vmatprep.subr.mxu0 0.0
    %139 = vmatpush1.msra.mxu0 0.0
    %140 = vmatprep.subr.mxu0 0.0
    %141 = vmatpush1.msra.mxu0 0.0
    %142 = vmatprep.subr.mxu0 0.0
    %143 = vmatpush1.msra.mxu0 0.0
    %144 = vmatprep.subr.mxu0 0.0
    %145 = vmatpush1.msra.mxu0 0.0
    %146 = vmatprep.subr.mxu0 0.0
    %147 = vmatpush1.msra.mxu0 0.0
    %148 = vmatprep.subr.mxu0 0.0
    %149 = vmatpush1.msra.mxu0 0.0
    %150 = vmatprep.subr.mxu0 0.0
    %151 = vmatpush1.msra.mxu0 0.0
    %152 = vmatprep.mubr.f32.mxu0 0.0
    %153 = vmatmul.mubr.f32.gmra.mrb[0].mxu0 %v83
    %v154 = vpop.f32.mrb[0].mxu0
    %v155 = vadd.f32 %v74, %v154
    %v156 = vpop.f32.mrb[0].mxu0
    %v157 = vadd.f32 %v78, %v156
    %158 = vmatprep.mubr.f32.mxu0 0.0
    %159 = vmatmul.mubr.f32.gmra.mrb[0].mxu0 %v86
    %v160 = vpop.f32.mrb[0].mxu0
    %v161 = vadd.f32 %v74, %v160
    %v162 = vpop.f32.mrb[0].mxu0
    %v163 = vadd.f32 %v78, %v162
    %164 = vdwg.mxu0
    %165 = vst [vmem:[#allocation2] sm:$0xff] %v155
    %166 = vst [vmem:[#allocation2 + $0x8] sm:$0xff] %v157
    %167 = vst [vmem:[#allocation2 + $0x10] sm:$0xff] %v161
    %168 = vst [vmem:[#allocation2 + $0x18] sm:$0xff] %v163
    %v169 = vld [vmem:[#allocation8] sm:$0xff]
    %v170 = vld [vmem:[#allocation8 + $0x8] sm:$0xff]
    %v171 = vld [vmem:[#allocation8 + $0x10] sm:$0xff]
    %v172 = vld [vmem:[#allocation8 + $0x18] sm:$0xff]
    %v173 = vld [vmem:[#allocation8 + $0x20] sm:$0xff]
    %v174 = vld [vmem:[#allocation8 + $0x28] sm:$0xff]
    %v175 = vld [vmem:[#allocation8 + $0x30] sm:$0xff]
    %v176 = vld [vmem:[#allocation8 + $0x38] sm:$0xff]
    %v177 = vld [vmem:[#allocation8 + $0x40] sm:$0xff]
    %v178 = vld [vmem:[#allocation8 + $0x48] sm:$0xff]
    %v179 = vld [vmem:[#allocation8 + $0x50] sm:$0xff]
    %v180 = vld [vmem:[#allocation8 + $0x58] sm:$0xff]
    %v181 = vld [vmem:[#allocation8 + $0x60] sm:$0xff]
    %v182 = vld [vmem:[#allocation8 + $0x68] sm:$0xff]
    %v183 = vld [vmem:[#allocation8 + $0x70] sm:$0xff]
    %v184 = vld [vmem:[#allocation8 + $0x78] sm:$0xff]
    %vm185 = vcmask 523264
    %v187 = vsel %vm185, 0.0, 0
    %189 = vmatprep.subr.mxu0 %v170
    %190 = vmatpush1.msra.mxu0 %v169
    %191 = vmatprep.subr.mxu0 %v172
    %192 = vmatpush1.msra.mxu0 %v171
    %193 = vmatprep.subr.mxu0 %v174
    %194 = vmatpush1.msra.mxu0 %v173
    %195 = vmatprep.subr.mxu0 %v176
    %196 = vmatpush1.msra.mxu0 %v175
    %197 = vmatprep.subr.mxu0 %v178
    %198 = vmatpush1.msra.mxu0 %v177
    %199 = vmatprep.subr.mxu0 %v180
    %200 = vmatpush1.msra.mxu0 %v179
    %201 = vmatprep.subr.mxu0 %v182
    %202 = vmatpush1.msra.mxu0 %v181
    %203 = vmatprep.subr.mxu0 %v184
    %204 = vmatpush1.msra.mxu0 %v183
    %205 = vmatprep.subr.mxu0 0.0
    %206 = vmatpush1.msra.mxu0 0.0
    %207 = vmatprep.subr.mxu0 0.0
    %208 = vmatpush1.msra.mxu0 0.0
    %209 = vmatprep.subr.mxu0 0.0
    %210 = vmatpush1.msra.mxu0 0.0
    %211 = vmatprep.subr.mxu0 0.0
    %212 = vmatpush1.msra.mxu0 0.0
    %213 = vmatprep.subr.mxu0 0.0
    %214 = vmatpush1.msra.mxu0 0.0
    %215 = vmatprep.subr.mxu0 0.0
    %216 = vmatpush1.msra.mxu0 0.0
    %217 = vmatprep.subr.mxu0 0.0
    %218 = vmatpush1.msra.mxu0 0.0
    %219 = vmatprep.subr.mxu0 0.0
    %220 = vmatpush1.msra.mxu0 0.0
    %221 = vmatprep.subr.mxu0 0.0
    %222 = vmatpush1.msra.mxu0 0.0
    %223 = vmatprep.subr.mxu0 0.0
    %224 = vmatpush1.msra.mxu0 0.0
    %225 = vmatprep.subr.mxu0 0.0
    %226 = vmatpush1.msra.mxu0 0.0
    %227 = vmatprep.subr.mxu0 0.0
    %228 = vmatpush1.msra.mxu0 0.0
    %229 = vmatprep.subr.mxu0 0.0
    %230 = vmatpush1.msra.mxu0 0.0
    %231 = vmatprep.subr.mxu0 0.0
    %232 = vmatpush1.msra.mxu0 0.0
    %233 = vmatprep.subr.mxu0 0.0
    %234 = vmatpush1.msra.mxu0 0.0
    %235 = vmatprep.subr.mxu0 0.0
    %236 = vmatpush1.msra.mxu0 0.0
    %237 = vmatprep.subr.mxu0 0.0
    %238 = vmatpush1.msra.mxu0 0.0
    %239 = vmatprep.subr.mxu0 0.0
    %240 = vmatpush1.msra.mxu0 0.0
    %241 = vmatprep.subr.mxu0 0.0
    %242 = vmatpush1.msra.mxu0 0.0
    %243 = vmatprep.subr.mxu0 0.0
    %244 = vmatpush1.msra.mxu0 0.0
    %245 = vmatprep.subr.mxu0 0.0
    %246 = vmatpush1.msra.mxu0 0.0
    %247 = vmatprep.subr.mxu0 0.0
    %248 = vmatpush1.msra.mxu0 0.0
    %249 = vmatprep.subr.mxu0 0.0
    %250 = vmatpush1.msra.mxu0 0.0
    %251 = vmatprep.subr.mxu0 0.0
    %252 = vmatpush1.msra.mxu0 0.0
    %253 = vmatprep.mubr.f32.mxu0 0.0
    %254 = vmatmul.mubr.f32.gmra.mrb[0].mxu0 %v187
    %v255 = vpop.f32.mrb[0].mxu0
    %v256 = vadd.f32 0.0, %v255
    %v257 = vpop.f32.mrb[0].mxu0
    %v258 = vadd.f32 0.0, %v257
    %259 = vdwg.mxu0
    %v260 = vld [vmem:[#allocation2] sm:$0x3]
    %v261 = vadd.f32 %v260, %v256
    %v262 = vld [vmem:[#allocation2 + $0x18] sm:$0xc0]
    %v264 = vrot.slane %v258, 2
    %v266 = vadd.f32 %v262, %v264
    %v267 = vxor.u32 %v261, 2147483648
    %v268 = vmul.f32 %v267, 1.442695
    %v269 = vpow.pop %v268
    %v270 = vadd.f32 %v269, 1.0
    %v271 = vrcp.pop %v270
    %v272 = vmul.f32 1.0, %v271
    %v273 = vtanh.pop %v261
    %v274 = vmul.f32 %v272, 0.0
    %276 = vrot.lane.b32.xlu0 %v273, 64
    %v277 = vpop.permute.xlu0 %276
    %v279 = vmul.f32 %v272, %v277
    %281 = vrot.lane.b32.xlu0 %v279, 32
    %v282 = vpop.permute.xlu0 %281
    %v284 = vadd.f32 %v274, %v282
    %v285 = vtanh.pop %v284
    %287 = vrot.lane.b32.xlu0 %v285, 64
    %v288 = vpop.permute.xlu0 %287
    %v290 = vmul.f32 %v272, %v288
    %v291 = vxor.u32 %v266, 2147483648
    %v292 = vmul.f32 %v291, 1.442695
    %v293 = vpow.pop %v292
    %v294 = vadd.f32 %v293, 1.0
    %v295 = vrcp.pop %v294
    %v296 = vmul.f32 1.0, %v295
    %v297 = vtanh.pop %v266
    %v298 = vmul.f32 %v296, 0.0
    %300 = vrot.lane.b32.xlu0 %v297, 64
    %v301 = vpop.permute.xlu0 %300
    %v303 = vmul.f32 %v296, %v301
    %305 = vrot.lane.b32.xlu0 %v303, 32
    %v306 = vpop.permute.xlu0 %305
    %v308 = vadd.f32 %v298, %v306
    %v309 = vtanh.pop %v308
    %311 = vrot.lane.b32.xlu0 %v309, 64
    %v312 = vpop.permute.xlu0 %311
    %v314 = vmul.f32 %v296, %v312
    %316 = vrot.lane.b32.xlu0 %v290, 32
    %v317 = vpop.permute.xlu0 %316
    %vm319 = vcmask 254976
    %320 = vst.msk [vmem:[#allocation9] sm:$0x3] %vm319, %v317
    %322 = vrot.lane.b32.xlu0 %v314, 64
    %v323 = vpop.permute.xlu0 %322
    %vm325 = vcmask 523526
    %326 = vst.msk [vmem:[#allocation9 + $0x8] sm:$0xc0] %vm325, %v323
    %v327 = vrot.slane %v314, 6
    %328 = vrot.lane.b32.xlu0 %v327, 64
    %v329 = vpop.permute.xlu0 %328
    %v331 = vsel %vm81, %v317, %v329
    %v333 = vsel %vm185, %v331, 0
    %335 = vmatprep.subr.mxu0 %v170
    %336 = vmatpush1.msra.mxu0 %v169
    %337 = vmatprep.subr.mxu0 %v172
    %338 = vmatpush1.msra.mxu0 %v171
    %339 = vmatprep.subr.mxu0 %v174
    %340 = vmatpush1.msra.mxu0 %v173
    %341 = vmatprep.subr.mxu0 %v176
    %342 = vmatpush1.msra.mxu0 %v175
    %343 = vmatprep.subr.mxu0 %v178
    %344 = vmatpush1.msra.mxu0 %v177
    %345 = vmatprep.subr.mxu0 %v180
    %346 = vmatpush1.msra.mxu0 %v179
    %347 = vmatprep.subr.mxu0 %v182
    %348 = vmatpush1.msra.mxu0 %v181
    %349 = vmatprep.subr.mxu0 %v184
    %350 = vmatpush1.msra.mxu0 %v183
    %351 = vmatprep.subr.mxu0 0.0
    %352 = vmatpush1.msra.mxu0 0.0
    %353 = vmatprep.subr.mxu0 0.0
    %354 = vmatpush1.msra.mxu0 0.0
    %355 = vmatprep.subr.mxu0 0.0
    %356 = vmatpush1.msra.mxu0 0.0
    %357 = vmatprep.subr.mxu0 0.0
    %358 = vmatpush1.msra.mxu0 0.0
    %359 = vmatprep.subr.mxu0 0.0
    %360 = vmatpush1.msra.mxu0 0.0
    %361 = vmatprep.subr.mxu0 0.0
    %362 = vmatpush1.msra.mxu0 0.0
    %363 = vmatprep.subr.mxu0 0.0
    %364 = vmatpush1.msra.mxu0 0.0
    %365 = vmatprep.subr.mxu0 0.0
    %366 = vmatpush1.msra.mxu0 0.0
    %367 = vmatprep.subr.mxu0 0.0
    %368 = vmatpush1.msra.mxu0 0.0
    %369 = vmatprep.subr.mxu0 0.0
    %370 = vmatpush1.msra.mxu0 0.0
    %371 = vmatprep.subr.mxu0 0.0
    %372 = vmatpush1.msra.mxu0 0.0
    %373 = vmatprep.subr.mxu0 0.0
    %374 = vmatpush1.msra.mxu0 0.0
    %375 = vmatprep.subr.mxu0 0.0
    %376 = vmatpush1.msra.mxu0 0.0
    %377 = vmatprep.subr.mxu0 0.0
    %378 = vmatpush1.msra.mxu0 0.0
    %379 = vmatprep.subr.mxu0 0.0
    %380 = vmatpush1.msra.mxu0 0.0
    %381 = vmatprep.subr.mxu0 0.0
    %382 = vmatpush1.msra.mxu0 0.0
    %383 = vmatprep.subr.mxu0 0.0
    %384 = vmatpush1.msra.mxu0 0.0
    %385 = vmatprep.subr.mxu0 0.0
    %386 = vmatpush1.msra.mxu0 0.0
    %387 = vmatprep.subr.mxu0 0.0
    %388 = vmatpush1.msra.mxu0 0.0
    %389 = vmatprep.subr.mxu0 0.0
    %390 = vmatpush1.msra.mxu0 0.0
    %391 = vmatprep.subr.mxu0 0.0
    %392 = vmatpush1.msra.mxu0 0.0
    %393 = vmatprep.subr.mxu0 0.0
    %394 = vmatpush1.msra.mxu0 0.0
    %395 = vmatprep.subr.mxu0 0.0
    %396 = vmatpush1.msra.mxu0 0.0
    %397 = vmatprep.subr.mxu0 0.0
    %398 = vmatpush1.msra.mxu0 0.0
    %399 = vmatprep.mubr.f32.mxu0 0.0
    %400 = vmatmul.mubr.f32.gmra.mrb[0].mxu0 %v333
    %v401 = vpop.f32.mrb[0].mxu0
    %v402 = vadd.f32 0.0, %v401
    %v403 = vpop.f32.mrb[0].mxu0
    %v404 = vadd.f32 0.0, %v403
    %405 = vdwg.mxu0
    %v406 = vld [vmem:[#allocation2] sm:$0xc]
    %v408 = vrot.slane %v402, 6
    %v410 = vadd.f32 %v406, %v408
    %v411 = vld [vmem:[#allocation2 + $0x18] sm:$0x30]
    %v413 = vrot.slane %v404, 4
    %v415 = vadd.f32 %v411, %v413
    %v416 = vxor.u32 %v410, 2147483648
    %v417 = vmul.f32 %v416, 1.442695
    %v418 = vpow.pop %v417
    %v419 = vadd.f32 %v418, 1.0
    %v420 = vrcp.pop %v419
    %v421 = vmul.f32 1.0, %v420
    %v422 = vtanh.pop %v410
    %v424 = vrot.slane %v284, 6
    %v426 = vmul.f32 %v421, %v424
    %428 = vrot.lane.b32.xlu0 %v422, 64
    %v429 = vpop.permute.xlu0 %428
    %v431 = vmul.f32 %v421, %v429
    %433 = vrot.lane.b32.xlu0 %v431, 32
    %v434 = vpop.permute.xlu0 %433
    %v436 = vadd.f32 %v426, %v434
    %v437 = vtanh.pop %v436
    %439 = vrot.lane.b32.xlu0 %v437, 64
    %v440 = vpop.permute.xlu0 %439
    %v442 = vmul.f32 %v421, %v440
    %v443 = vxor.u32 %v415, 2147483648
    %v444 = vmul.f32 %v443, 1.442695
    %v445 = vpow.pop %v444
    %v446 = vadd.f32 %v445, 1.0
    %v447 = vrcp.pop %v446
    %v448 = vmul.f32 1.0, %v447
    %v449 = vtanh.pop %v415
    %v451 = vrot.slane %v308, 2
    %v453 = vmul.f32 %v448, %v451
    %455 = vrot.lane.b32.xlu0 %v449, 64
    %v456 = vpop.permute.xlu0 %455
    %v458 = vmul.f32 %v448, %v456
    %460 = vrot.lane.b32.xlu0 %v458, 32
    %v461 = vpop.permute.xlu0 %460
    %v463 = vadd.f32 %v453, %v461
    %v464 = vtanh.pop %v463
    %466 = vrot.lane.b32.xlu0 %v464, 64
    %v467 = vpop.permute.xlu0 %466
    %v469 = vmul.f32 %v448, %v467
    %471 = vrot.lane.b32.xlu0 %v442, 32
    %v472 = vpop.permute.xlu0 %471
    %vm474 = vcmask 257026
    %475 = vst.msk [vmem:[#allocation9] sm:$0xc] %vm474, %v472
    %477 = vrot.lane.b32.xlu0 %v469, 64
    %v478 = vpop.permute.xlu0 %477
    %vm480 = vcmask 521476
    %481 = vst.msk [vmem:[#allocation9 + $0x8] sm:$0x30] %vm480, %v478
    %v482 = vrot.slane %v469, 2
    %483 = vrot.lane.b32.xlu0 %v482, 64
    %v484 = vpop.permute.xlu0 %483
    %v486 = vsel %vm81, %v472, %v484
    %v488 = vrot.slane %v486, 2
    %v489 = vsel %vm185, %v488, 0
    %491 = vmatprep.subr.mxu0 %v170
    %492 = vmatpush1.msra.mxu0 %v169
    %493 = vmatprep.subr.mxu0 %v172
    %494 = vmatpush1.msra.mxu0 %v171
    %495 = vmatprep.subr.mxu0 %v174
    %496 = vmatpush1.msra.mxu0 %v173
    %497 = vmatprep.subr.mxu0 %v176
    %498 = vmatpush1.msra.mxu0 %v175
    %499 = vmatprep.subr.mxu0 %v178
    %500 = vmatpush1.msra.mxu0 %v177
    %501 = vmatprep.subr.mxu0 %v180
    %502 = vmatpush1.msra.mxu0 %v179
    %503 = vmatprep.subr.mxu0 %v182
    %504 = vmatpush1.msra.mxu0 %v181
    %505 = vmatprep.subr.mxu0 %v184
    %506 = vmatpush1.msra.mxu0 %v183
    %507 = vmatprep.subr.mxu0 0.0
    %508 = vmatpush1.msra.mxu0 0.0
    %509 = vmatprep.subr.mxu0 0.0
    %510 = vmatpush1.msra.mxu0 0.0
    %511 = vmatprep.subr.mxu0 0.0
    %512 = vmatpush1.msra.mxu0 0.0
    %513 = vmatprep.subr.mxu0 0.0
    %514 = vmatpush1.msra.mxu0 0.0
    %515 = vmatprep.subr.mxu0 0.0
    %516 = vmatpush1.msra.mxu0 0.0
    %517 = vmatprep.subr.mxu0 0.0
    %518 = vmatpush1.msra.mxu0 0.0
    %519 = vmatprep.subr.mxu0 0.0
    %520 = vmatpush1.msra.mxu0 0.0
    %521 = vmatprep.subr.mxu0 0.0
    %522 = vmatpush1.msra.mxu0 0.0
    %523 = vmatprep.subr.mxu0 0.0
    %524 = vmatpush1.msra.mxu0 0.0
    %525 = vmatprep.subr.mxu0 0.0
    %526 = vmatpush1.msra.mxu0 0.0
    %527 = vmatprep.subr.mxu0 0.0
    %528 = vmatpush1.msra.mxu0 0.0
    %529 = vmatprep.subr.mxu0 0.0
    %530 = vmatpush1.msra.mxu0 0.0
    %531 = vmatprep.subr.mxu0 0.0
    %532 = vmatpush1.msra.mxu0 0.0
    %533 = vmatprep.subr.mxu0 0.0
    %534 = vmatpush1.msra.mxu0 0.0
    %535 = vmatprep.subr.mxu0 0.0
    %536 = vmatpush1.msra.mxu0 0.0
    %537 = vmatprep.subr.mxu0 0.0
    %538 = vmatpush1.msra.mxu0 0.0
    %539 = vmatprep.subr.mxu0 0.0
    %540 = vmatpush1.msra.mxu0 0.0
    %541 = vmatprep.subr.mxu0 0.0
    %542 = vmatpush1.msra.mxu0 0.0
    %543 = vmatprep.subr.mxu0 0.0
    %544 = vmatpush1.msra.mxu0 0.0
    %545 = vmatprep.subr.mxu0 0.0
    %546 = vmatpush1.msra.mxu0 0.0
    %547 = vmatprep.subr.mxu0 0.0
    %548 = vmatpush1.msra.mxu0 0.0
    %549 = vmatprep.subr.mxu0 0.0
    %550 = vmatpush1.msra.mxu0 0.0
    %551 = vmatprep.subr.mxu0 0.0
    %552 = vmatpush1.msra.mxu0 0.0
    %553 = vmatprep.subr.mxu0 0.0
    %554 = vmatpush1.msra.mxu0 0.0
    %555 = vmatprep.mubr.f32.mxu0 0.0
    %556 = vmatmul.mubr.f32.gmra.mrb[0].mxu0 %v489
    %v557 = vpop.f32.mrb[0].mxu0
    %v558 = vadd.f32 0.0, %v557
    %v559 = vpop.f32.mrb[0].mxu0
    %v560 = vadd.f32 0.0, %v559
    %561 = vdwg.mxu0
    %v562 = vld [vmem:[#allocation2] sm:$0x30]
    %v564 = vrot.slane %v558, 4
    %v566 = vadd.f32 %v562, %v564
    %v567 = vld [vmem:[#allocation2 + $0x18] sm:$0xc]
    %v569 = vrot.slane %v560, 6
    %v571 = vadd.f32 %v567, %v569
    %v572 = vxor.u32 %v566, 2147483648
    %v573 = vmul.f32 %v572, 1.442695
    %v574 = vpow.pop %v573
    %v575 = vadd.f32 %v574, 1.0
    %v576 = vrcp.pop %v575
    %v577 = vmul.f32 1.0, %v576
    %v578 = vtanh.pop %v566
    %v580 = vrot.slane %v436, 6
    %v582 = vmul.f32 %v577, %v580
    %584 = vrot.lane.b32.xlu0 %v578, 64
    %v585 = vpop.permute.xlu0 %584
    %v587 = vmul.f32 %v577, %v585
    %589 = vrot.lane.b32.xlu0 %v587, 32
    %v590 = vpop.permute.xlu0 %589
    %v592 = vadd.f32 %v582, %v590
    %v593 = vtanh.pop %v592
    %595 = vrot.lane.b32.xlu0 %v593, 64
    %v596 = vpop.permute.xlu0 %595
    %v598 = vmul.f32 %v577, %v596
    %v599 = vxor.u32 %v571, 2147483648
    %v600 = vmul.f32 %v599, 1.442695
    %v601 = vpow.pop %v600
    %v602 = vadd.f32 %v601, 1.0
    %v603 = vrcp.pop %v602
    %v604 = vmul.f32 1.0, %v603
    %v605 = vtanh.pop %v571
    %v607 = vrot.slane %v463, 2
    %v609 = vmul.f32 %v604, %v607
    %611 = vrot.lane.b32.xlu0 %v605, 64
    %v612 = vpop.permute.xlu0 %611
    %v614 = vmul.f32 %v604, %v612
    %616 = vrot.lane.b32.xlu0 %v614, 32
    %v617 = vpop.permute.xlu0 %616
    %v619 = vadd.f32 %v609, %v617
    %v620 = vtanh.pop %v619
    %622 = vrot.lane.b32.xlu0 %v620, 64
    %v623 = vpop.permute.xlu0 %622
    %v625 = vmul.f32 %v604, %v623
    %627 = vrot.lane.b32.xlu0 %v598, 32
    %v628 = vpop.permute.xlu0 %627
    %vm630 = vcmask 259076
    %631 = vst.msk [vmem:[#allocation9] sm:$0x30] %vm630, %v628
    %633 = vrot.lane.b32.xlu0 %v625, 64
    %v634 = vpop.permute.xlu0 %633
    %vm636 = vcmask 519426
    %637 = vst.msk [vmem:[#allocation9 + $0x8] sm:$0xc] %vm636, %v634
    %v638 = vrot.slane %v625, 6
    %639 = vrot.lane.b32.xlu0 %v638, 64
    %v640 = vpop.permute.xlu0 %639
    %v642 = vsel %vm81, %v628, %v640
    %v644 = vrot.slane %v642, 4
    %v645 = vsel %vm185, %v644, 0
    %647 = vmatprep.subr.mxu0 %v170
    %648 = vmatpush1.msra.mxu0 %v169
    %649 = vmatprep.subr.mxu0 %v172
    %650 = vmatpush1.msra.mxu0 %v171
    %651 = vmatprep.subr.mxu0 %v174
    %652 = vmatpush1.msra.mxu0 %v173
    %653 = vmatprep.subr.mxu0 %v176
    %654 = vmatpush1.msra.mxu0 %v175
    %655 = vmatprep.subr.mxu0 %v178
    %656 = vmatpush1.msra.mxu0 %v177
    %657 = vmatprep.subr.mxu0 %v180
    %658 = vmatpush1.msra.mxu0 %v179
    %659 = vmatprep.subr.mxu0 %v182
    %660 = vmatpush1.msra.mxu0 %v181
    %661 = vmatprep.subr.mxu0 %v184
    %662 = vmatpush1.msra.mxu0 %v183
    %663 = vmatprep.subr.mxu0 0.0
    %664 = vmatpush1.msra.mxu0 0.0
    %665 = vmatprep.subr.mxu0 0.0
    %666 = vmatpush1.msra.mxu0 0.0
    %667 = vmatprep.subr.mxu0 0.0
    %668 = vmatpush1.msra.mxu0 0.0
    %669 = vmatprep.subr.mxu0 0.0
    %670 = vmatpush1.msra.mxu0 0.0
    %671 = vmatprep.subr.mxu0 0.0
    %672 = vmatpush1.msra.mxu0 0.0
    %673 = vmatprep.subr.mxu0 0.0
    %674 = vmatpush1.msra.mxu0 0.0
    %675 = vmatprep.subr.mxu0 0.0
    %676 = vmatpush1.msra.mxu0 0.0
    %677 = vmatprep.subr.mxu0 0.0
    %678 = vmatpush1.msra.mxu0 0.0
    %679 = vmatprep.subr.mxu0 0.0
    %680 = vmatpush1.msra.mxu0 0.0
    %681 = vmatprep.subr.mxu0 0.0
    %682 = vmatpush1.msra.mxu0 0.0
    %683 = vmatprep.subr.mxu0 0.0
    %684 = vmatpush1.msra.mxu0 0.0
    %685 = vmatprep.subr.mxu0 0.0
    %686 = vmatpush1.msra.mxu0 0.0
    %687 = vmatprep.subr.mxu0 0.0
    %688 = vmatpush1.msra.mxu0 0.0
    %689 = vmatprep.subr.mxu0 0.0
    %690 = vmatpush1.msra.mxu0 0.0
    %691 = vmatprep.subr.mxu0 0.0
    %692 = vmatpush1.msra.mxu0 0.0
    %693 = vmatprep.subr.mxu0 0.0
    %694 = vmatpush1.msra.mxu0 0.0
    %695 = vmatprep.subr.mxu0 0.0
    %696 = vmatpush1.msra.mxu0 0.0
    %697 = vmatprep.subr.mxu0 0.0
    %698 = vmatpush1.msra.mxu0 0.0
    %699 = vmatprep.subr.mxu0 0.0
    %700 = vmatpush1.msra.mxu0 0.0
    %701 = vmatprep.subr.mxu0 0.0
    %702 = vmatpush1.msra.mxu0 0.0
    %703 = vmatprep.subr.mxu0 0.0
    %704 = vmatpush1.msra.mxu0 0.0
    %705 = vmatprep.subr.mxu0 0.0
    %706 = vmatpush1.msra.mxu0 0.0
    %707 = vmatprep.subr.mxu0 0.0
    %708 = vmatpush1.msra.mxu0 0.0
    %709 = vmatprep.subr.mxu0 0.0
    %710 = vmatpush1.msra.mxu0 0.0
    %711 = vmatprep.mubr.f32.mxu0 0.0
    %712 = vmatmul.mubr.f32.gmra.mrb[0].mxu0 %v645
    %v713 = vpop.f32.mrb[0].mxu0
    %v714 = vadd.f32 0.0, %v713
    %v715 = vpop.f32.mrb[0].mxu0
    %v716 = vadd.f32 0.0, %v715
    %717 = vdwg.mxu0
    %v718 = vld [vmem:[#allocation2] sm:$0xc0]
    %v720 = vrot.slane %v714, 2
    %v722 = vadd.f32 %v718, %v720
    %v723 = vld [vmem:[#allocation2 + $0x18] sm:$0x3]
    %v724 = vadd.f32 %v723, %v716
    %v725 = vxor.u32 %v722, 2147483648
    %v726 = vmul.f32 %v725, 1.442695
    %v727 = vpow.pop %v726
    %v728 = vadd.f32 %v727, 1.0
    %v729 = vrcp.pop %v728
    %v730 = vmul.f32 1.0, %v729
    %v731 = vtanh.pop %v722
    %v733 = vrot.slane %v592, 6
    %v735 = vmul.f32 %v730, %v733
    %737 = vrot.lane.b32.xlu0 %v731, 64
    %v738 = vpop.permute.xlu0 %737
    %v740 = vmul.f32 %v730, %v738
    %742 = vrot.lane.b32.xlu0 %v740, 32
    %v743 = vpop.permute.xlu0 %742
    %v745 = vadd.f32 %v735, %v743
    %v746 = vtanh.pop %v745
    %748 = vrot.lane.b32.xlu0 %v746, 64
    %v749 = vpop.permute.xlu0 %748
    %v751 = vmul.f32 %v730, %v749
    %v752 = vxor.u32 %v724, 2147483648
    %v753 = vmul.f32 %v752, 1.442695
    %v754 = vpow.pop %v753
    %v755 = vadd.f32 %v754, 1.0
    %v756 = vrcp.pop %v755
    %v757 = vmul.f32 1.0, %v756
    %v758 = vtanh.pop %v724
    %v760 = vrot.slane %v619, 2
    %v762 = vmul.f32 %v757, %v760
    %764 = vrot.lane.b32.xlu0 %v758, 64
    %v765 = vpop.permute.xlu0 %764
    %v767 = vmul.f32 %v757, %v765
    %769 = vrot.lane.b32.xlu0 %v767, 32
    %v770 = vpop.permute.xlu0 %769
    %v772 = vadd.f32 %v762, %v770
    %v773 = vtanh.pop %v772
    %775 = vrot.lane.b32.xlu0 %v773, 64
    %v776 = vpop.permute.xlu0 %775
    %v778 = vmul.f32 %v757, %v776
    %780 = vrot.lane.b32.xlu0 %v751, 32
    %v781 = vpop.permute.xlu0 %780
    %vm783 = vcmask 261126
    %784 = vst.msk [vmem:[#allocation9] sm:$0xc0] %vm783, %v781
    %786 = vrot.lane.b32.xlu0 %v778, 64
    %v787 = vpop.permute.xlu0 %786
    %vm789 = vcmask 517376
    %790 = vst.msk [vmem:[#allocation9 + $0x8] sm:$0x3] %vm789, %v787
    %v791 = vrot.slane %v778, 2
    %792 = vrot.lane.b32.xlu0 %v791, 64
    %v793 = vpop.permute.xlu0 %792
    %v795 = vsel %vm81, %v781, %v793
    %v797 = vrot.slane %v795, 6
    %v798 = vsel %vm185, %v797, 0
    %800 = vmatprep.subr.mxu0 %v170
    %801 = vmatpush1.msra.mxu0 %v169
    %802 = vmatprep.subr.mxu0 %v172
    %803 = vmatpush1.msra.mxu0 %v171
    %804 = vmatprep.subr.mxu0 %v174
    %805 = vmatpush1.msra.mxu0 %v173
    %806 = vmatprep.subr.mxu0 %v176
    %807 = vmatpush1.msra.mxu0 %v175
    %808 = vmatprep.subr.mxu0 %v178
    %809 = vmatpush1.msra.mxu0 %v177
    %810 = vmatprep.subr.mxu0 %v180
    %811 = vmatpush1.msra.mxu0 %v179
    %812 = vmatprep.subr.mxu0 %v182
    %813 = vmatpush1.msra.mxu0 %v181
    %814 = vmatprep.subr.mxu0 %v184
    %815 = vmatpush1.msra.mxu0 %v183
    %816 = vmatprep.subr.mxu0 0.0
    %817 = vmatpush1.msra.mxu0 0.0
    %818 = vmatprep.subr.mxu0 0.0
    %819 = vmatpush1.msra.mxu0 0.0
    %820 = vmatprep.subr.mxu0 0.0
    %821 = vmatpush1.msra.mxu0 0.0
    %822 = vmatprep.subr.mxu0 0.0
    %823 = vmatpush1.msra.mxu0 0.0
    %824 = vmatprep.subr.mxu0 0.0
    %825 = vmatpush1.msra.mxu0 0.0
    %826 = vmatprep.subr.mxu0 0.0
    %827 = vmatpush1.msra.mxu0 0.0
    %828 = vmatprep.subr.mxu0 0.0
    %829 = vmatpush1.msra.mxu0 0.0
    %830 = vmatprep.subr.mxu0 0.0
    %831 = vmatpush1.msra.mxu0 0.0
    %832 = vmatprep.subr.mxu0 0.0
    %833 = vmatpush1.msra.mxu0 0.0
    %834 = vmatprep.subr.mxu0 0.0
    %835 = vmatpush1.msra.mxu0 0.0
    %836 = vmatprep.subr.mxu0 0.0
    %837 = vmatpush1.msra.mxu0 0.0
    %838 = vmatprep.subr.mxu0 0.0
    %839 = vmatpush1.msra.mxu0 0.0
    %840 = vmatprep.subr.mxu0 0.0
    %841 = vmatpush1.msra.mxu0 0.0
    %842 = vmatprep.subr.mxu0 0.0
    %843 = vmatpush1.msra.mxu0 0.0
    %844 = vmatprep.subr.mxu0 0.0
    %845 = vmatpush1.msra.mxu0 0.0
    %846 = vmatprep.subr.mxu0 0.0
    %847 = vmatpush1.msra.mxu0 0.0
    %848 = vmatprep.subr.mxu0 0.0
    %849 = vmatpush1.msra.mxu0 0.0
    %850 = vmatprep.subr.mxu0 0.0
    %851 = vmatpush1.msra.mxu0 0.0
    %852 = vmatprep.subr.mxu0 0.0
    %853 = vmatpush1.msra.mxu0 0.0
    %854 = vmatprep.subr.mxu0 0.0
    %855 = vmatpush1.msra.mxu0 0.0
    %856 = vmatprep.subr.mxu0 0.0
    %857 = vmatpush1.msra.mxu0 0.0
    %858 = vmatprep.subr.mxu0 0.0
    %859 = vmatpush1.msra.mxu0 0.0
    %860 = vmatprep.subr.mxu0 0.0
    %861 = vmatpush1.msra.mxu0 0.0
    %862 = vmatprep.subr.mxu0 0.0
    %863 = vmatpush1.msra.mxu0 0.0
    %864 = vmatprep.mubr.f32.mxu0 0.0
    %865 = vmatmul.mubr.f32.gmra.mrb[0].mxu0 %v798
    %v866 = vpop.f32.mrb[0].mxu0
    %v867 = vadd.f32 0.0, %v866
    %v868 = vpop.f32.mrb[0].mxu0
    %v869 = vadd.f32 0.0, %v868
    %870 = vdwg.mxu0
    %v871 = vld [vmem:[#allocation2 + $0x10] sm:$0x3]
    %v872 = vadd.f32 %v871, %v867
    %v873 = vld [vmem:[#allocation2 + $0x8] sm:$0xc0]
    %v875 = vrot.slane %v869, 2
    %v877 = vadd.f32 %v873, %v875
    %v878 = vxor.u32 %v872, 2147483648
    %v879 = vmul.f32 %v878, 1.442695
    %v880 = vpow.pop %v879
    %v881 = vadd.f32 %v880, 1.0
    %v882 = vrcp.pop %v881
    %v883 = vmul.f32 1.0, %v882
    %v884 = vtanh.pop %v872
    %v886 = vrot.slane %v745, 6
    %v888 = vmul.f32 %v883, %v886
    %890 = vrot.lane.b32.xlu0 %v884, 64
    %v891 = vpop.permute.xlu0 %890
    %v893 = vmul.f32 %v883, %v891
    %895 = vrot.lane.b32.xlu0 %v893, 32
    %v896 = vpop.permute.xlu0 %895
    %v898 = vadd.f32 %v888, %v896
    %v899 = vtanh.pop %v898
    %901 = vrot.lane.b32.xlu0 %v899, 64
    %v902 = vpop.permute.xlu0 %901
    %v904 = vmul.f32 %v883, %v902
    %v905 = vxor.u32 %v877, 2147483648
    %v906 = vmul.f32 %v905, 1.442695
    %v907 = vpow.pop %v906
    %v908 = vadd.f32 %v907, 1.0
    %v909 = vrcp.pop %v908
    %v910 = vmul.f32 1.0, %v909
    %v911 = vtanh.pop %v877
    %v913 = vrot.slane %v772, 2
    %v915 = vmul.f32 %v910, %v913
    %917 = vrot.lane.b32.xlu0 %v911, 64
    %v918 = vpop.permute.xlu0 %917
    %v920 = vmul.f32 %v910, %v918
    %922 = vrot.lane.b32.xlu0 %v920, 32
    %v923 = vpop.permute.xlu0 %922
    %v925 = vadd.f32 %v915, %v923
    %v926 = vtanh.pop %v925
    %928 = vrot.lane.b32.xlu0 %v926, 64
    %v929 = vpop.permute.xlu0 %928
    %v931 = vmul.f32 %v910, %v929
    %933 = vrot.lane.b32.xlu0 %v904, 32
    %v934 = vpop.permute.xlu0 %933
    %936 = vst.msk [vmem:[#allocation9 + $0x8] sm:$0x3] %vm319, %v934
    %938 = vrot.lane.b32.xlu0 %v931, 64
    %v939 = vpop.permute.xlu0 %938
    %941 = vst.msk [vmem:[#allocation9] sm:$0xc0] %vm325, %v939
    %v942 = vrot.slane %v931, 6
    %943 = vrot.lane.b32.xlu0 %v942, 64
    %v944 = vpop.permute.xlu0 %943
    %v946 = vsel %vm81, %v934, %v944
    %v948 = vsel %vm185, %v946, 0
    %950 = vmatprep.subr.mxu0 %v170
    %951 = vmatpush1.msra.mxu0 %v169
    %952 = vmatprep.subr.mxu0 %v172
    %953 = vmatpush1.msra.mxu0 %v171
    %954 = vmatprep.subr.mxu0 %v174
    %955 = vmatpush1.msra.mxu0 %v173
    %956 = vmatprep.subr.mxu0 %v176
    %957 = vmatpush1.msra.mxu0 %v175
    %958 = vmatprep.subr.mxu0 %v178
    %959 = vmatpush1.msra.mxu0 %v177
    %960 = vmatprep.subr.mxu0 %v180
    %961 = vmatpush1.msra.mxu0 %v179
    %962 = vmatprep.subr.mxu0 %v182
    %963 = vmatpush1.msra.mxu0 %v181
    %964 = vmatprep.subr.mxu0 %v184
    %965 = vmatpush1.msra.mxu0 %v183
    %966 = vmatprep.subr.mxu0 0.0
    %967 = vmatpush1.msra.mxu0 0.0
    %968 = vmatprep.subr.mxu0 0.0
    %969 = vmatpush1.msra.mxu0 0.0
    %970 = vmatprep.subr.mxu0 0.0
    %971 = vmatpush1.msra.mxu0 0.0
    %972 = vmatprep.subr.mxu0 0.0
    %973 = vmatpush1.msra.mxu0 0.0
    %974 = vmatprep.subr.mxu0 0.0
    %975 = vmatpush1.msra.mxu0 0.0
    %976 = vmatprep.subr.mxu0 0.0
    %977 = vmatpush1.msra.mxu0 0.0
    %978 = vmatprep.subr.mxu0 0.0
    %979 = vmatpush1.msra.mxu0 0.0
    %980 = vmatprep.subr.mxu0 0.0
    %981 = vmatpush1.msra.mxu0 0.0
    %982 = vmatprep.subr.mxu0 0.0
    %983 = vmatpush1.msra.mxu0 0.0
    %984 = vmatprep.subr.mxu0 0.0
    %985 = vmatpush1.msra.mxu0 0.0
    %986 = vmatprep.subr.mxu0 0.0
    %987 = vmatpush1.msra.mxu0 0.0
    %988 = vmatprep.subr.mxu0 0.0
    %989 = vmatpush1.msra.mxu0 0.0
    %990 = vmatprep.subr.mxu0 0.0
    %991 = vmatpush1.msra.mxu0 0.0
    %992 = vmatprep.subr.mxu0 0.0
    %993 = vmatpush1.msra.mxu0 0.0
    %994 = vmatprep.subr.mxu0 0.0
    %995 = vmatpush1.msra.mxu0 0.0
    %996 = vmatprep.subr.mxu0 0.0
    %997 = vmatpush1.msra.mxu0 0.0
    %998 = vmatprep.subr.mxu0 0.0
    %999 = vmatpush1.msra.mxu0 0.0
    %1000 = vmatprep.subr.mxu0 0.0
    %1001 = vmatpush1.msra.mxu0 0.0
    %1002 = vmatprep.subr.mxu0 0.0
    %1003 = vmatpush1.msra.mxu0 0.0
    %1004 = vmatprep.subr.mxu0 0.0
    %1005 = vmatpush1.msra.mxu0 0.0
    %1006 = vmatprep.subr.mxu0 0.0
    %1007 = vmatpush1.msra.mxu0 0.0
    %1008 = vmatprep.subr.mxu0 0.0
    %1009 = vmatpush1.msra.mxu0 0.0
    %1010 = vmatprep.subr.mxu0 0.0
    %1011 = vmatpush1.msra.mxu0 0.0
    %1012 = vmatprep.subr.mxu0 0.0
    %1013 = vmatpush1.msra.mxu0 0.0
    %1014 = vmatprep.mubr.f32.mxu0 0.0
    %1015 = vmatmul.mubr.f32.gmra.mrb[0].mxu0 %v948
    %v1016 = vpop.f32.mrb[0].mxu0
    %v1017 = vadd.f32 0.0, %v1016
    %v1018 = vpop.f32.mrb[0].mxu0
    %v1019 = vadd.f32 0.0, %v1018
    %1020 = vdwg.mxu0
    %v1021 = vld [vmem:[#allocation2 + $0x10] sm:$0xc]
    %v1023 = vrot.slane %v1017, 6
    %v1025 = vadd.f32 %v1021, %v1023
    %v1026 = vld [vmem:[#allocation2 + $0x8] sm:$0x30]
    %v1028 = vrot.slane %v1019, 4
    %v1030 = vadd.f32 %v1026, %v1028
    %v1031 = vxor.u32 %v1025, 2147483648
    %v1032 = vmul.f32 %v1031, 1.442695
    %v1033 = vpow.pop %v1032
    %v1034 = vadd.f32 %v1033, 1.0
    %v1035 = vrcp.pop %v1034
    %v1036 = vmul.f32 1.0, %v1035
    %v1037 = vtanh.pop %v1025
    %v1039 = vrot.slane %v898, 6
    %v1041 = vmul.f32 %v1036, %v1039
    %1043 = vrot.lane.b32.xlu0 %v1037, 64
    %v1044 = vpop.permute.xlu0 %1043
    %v1046 = vmul.f32 %v1036, %v1044
    %1048 = vrot.lane.b32.xlu0 %v1046, 32
    %v1049 = vpop.permute.xlu0 %1048
    %v1051 = vadd.f32 %v1041, %v1049
    %v1052 = vtanh.pop %v1051
    %1054 = vrot.lane.b32.xlu0 %v1052, 64
    %v1055 = vpop.permute.xlu0 %1054
    %v1057 = vmul.f32 %v1036, %v1055
    %v1058 = vxor.u32 %v1030, 2147483648
    %v1059 = vmul.f32 %v1058, 1.442695
    %v1060 = vpow.pop %v1059
    %v1061 = vadd.f32 %v1060, 1.0
    %v1062 = vrcp.pop %v1061
    %v1063 = vmul.f32 1.0, %v1062
    %v1064 = vtanh.pop %v1030
    %v1066 = vrot.slane %v925, 2
    %v1068 = vmul.f32 %v1063, %v1066
    %1070 = vrot.lane.b32.xlu0 %v1064, 64
    %v1071 = vpop.permute.xlu0 %1070
    %v1073 = vmul.f32 %v1063, %v1071
    %1075 = vrot.lane.b32.xlu0 %v1073, 32
    %v1076 = vpop.permute.xlu0 %1075
    %v1078 = vadd.f32 %v1068, %v1076
    %v1079 = vtanh.pop %v1078
    %1081 = vrot.lane.b32.xlu0 %v1079, 64
    %v1082 = vpop.permute.xlu0 %1081
    %v1084 = vmul.f32 %v1063, %v1082
    %1086 = vrot.lane.b32.xlu0 %v1057, 32
    %v1087 = vpop.permute.xlu0 %1086
    %1089 = vst.msk [vmem:[#allocation9 + $0x8] sm:$0xc] %vm474, %v1087
    %1091 = vrot.lane.b32.xlu0 %v1084, 64
    %v1092 = vpop.permute.xlu0 %1091
    %1094 = vst.msk [vmem:[#allocation9] sm:$0x30] %vm480, %v1092
    %v1095 = vrot.slane %v1084, 2
    %1096 = vrot.lane.b32.xlu0 %v1095, 64
    %v1097 = vpop.permute.xlu0 %1096
    %v1099 = vsel %vm81, %v1087, %v1097
    %v1101 = vrot.slane %v1099, 2
    %v1102 = vsel %vm185, %v1101, 0
    %1104 = vmatprep.subr.mxu0 %v170
    %1105 = vmatpush1.msra.mxu0 %v169
    %1106 = vmatprep.subr.mxu0 %v172
    %1107 = vmatpush1.msra.mxu0 %v171
    %1108 = vmatprep.subr.mxu0 %v174
    %1109 = vmatpush1.msra.mxu0 %v173
    %1110 = vmatprep.subr.mxu0 %v176
    %1111 = vmatpush1.msra.mxu0 %v175
    %1112 = vmatprep.subr.mxu0 %v178
    %1113 = vmatpush1.msra.mxu0 %v177
    %1114 = vmatprep.subr.mxu0 %v180
    %1115 = vmatpush1.msra.mxu0 %v179
    %1116 = vmatprep.subr.mxu0 %v182
    %1117 = vmatpush1.msra.mxu0 %v181
    %1118 = vmatprep.subr.mxu0 %v184
    %1119 = vmatpush1.msra.mxu0 %v183
    %1120 = vmatprep.subr.mxu0 0.0
    %1121 = vmatpush1.msra.mxu0 0.0
    %1122 = vmatprep.subr.mxu0 0.0
    %1123 = vmatpush1.msra.mxu0 0.0
    %1124 = vmatprep.subr.mxu0 0.0
    %1125 = vmatpush1.msra.mxu0 0.0
    %1126 = vmatprep.subr.mxu0 0.0
    %1127 = vmatpush1.msra.mxu0 0.0
    %1128 = vmatprep.subr.mxu0 0.0
    %1129 = vmatpush1.msra.mxu0 0.0
    %1130 = vmatprep.subr.mxu0 0.0
    %1131 = vmatpush1.msra.mxu0 0.0
    %1132 = vmatprep.subr.mxu0 0.0
    %1133 = vmatpush1.msra.mxu0 0.0
    %1134 = vmatprep.subr.mxu0 0.0
    %1135 = vmatpush1.msra.mxu0 0.0
    %1136 = vmatprep.subr.mxu0 0.0
    %1137 = vmatpush1.msra.mxu0 0.0
    %1138 = vmatprep.subr.mxu0 0.0
    %1139 = vmatpush1.msra.mxu0 0.0
    %1140 = vmatprep.subr.mxu0 0.0
    %1141 = vmatpush1.msra.mxu0 0.0
    %1142 = vmatprep.subr.mxu0 0.0
    %1143 = vmatpush1.msra.mxu0 0.0
    %1144 = vmatprep.subr.mxu0 0.0
    %1145 = vmatpush1.msra.mxu0 0.0
    %1146 = vmatprep.subr.mxu0 0.0
    %1147 = vmatpush1.msra.mxu0 0.0
    %1148 = vmatprep.subr.mxu0 0.0
    %1149 = vmatpush1.msra.mxu0 0.0
    %1150 = vmatprep.subr.mxu0 0.0
    %1151 = vmatpush1.msra.mxu0 0.0
    %1152 = vmatprep.subr.mxu0 0.0
    %1153 = vmatpush1.msra.mxu0 0.0
    %1154 = vmatprep.subr.mxu0 0.0
    %1155 = vmatpush1.msra.mxu0 0.0
    %1156 = vmatprep.subr.mxu0 0.0
    %1157 = vmatpush1.msra.mxu0 0.0
    %1158 = vmatprep.subr.mxu0 0.0
    %1159 = vmatpush1.msra.mxu0 0.0
    %1160 = vmatprep.subr.mxu0 0.0
    %1161 = vmatpush1.msra.mxu0 0.0
    %1162 = vmatprep.subr.mxu0 0.0
    %1163 = vmatpush1.msra.mxu0 0.0
    %1164 = vmatprep.subr.mxu0 0.0
    %1165 = vmatpush1.msra.mxu0 0.0
    %1166 = vmatprep.subr.mxu0 0.0
    %1167 = vmatpush1.msra.mxu0 0.0
    %1168 = vmatprep.mubr.f32.mxu0 0.0
    %1169 = vmatmul.mubr.f32.gmra.mrb[0].mxu0 %v1102
    %v1170 = vpop.f32.mrb[0].mxu0
    %v1171 = vadd.f32 0.0, %v1170
    %v1172 = vpop.f32.mrb[0].mxu0
    %v1173 = vadd.f32 0.0, %v1172
    %1174 = vdwg.mxu0
    %v1175 = vld [vmem:[#allocation2 + $0x10] sm:$0x30]
    %v1177 = vrot.slane %v1171, 4
    %v1179 = vadd.f32 %v1175, %v1177
    %v1180 = vld [vmem:[#allocation2 + $0x8] sm:$0xc]
    %v1182 = vrot.slane %v1173, 6
    %v1184 = vadd.f32 %v1180, %v1182
    %v1185 = vxor.u32 %v1179, 2147483648
    %v1186 = vmul.f32 %v1185, 1.442695
    %v1187 = vpow.pop %v1186
    %v1188 = vadd.f32 %v1187, 1.0
    %v1189 = vrcp.pop %v1188
    %v1190 = vmul.f32 1.0, %v1189
    %v1191 = vtanh.pop %v1179
    %v1193 = vrot.slane %v1051, 6
    %v1195 = vmul.f32 %v1190, %v1193
    %1197 = vrot.lane.b32.xlu0 %v1191, 64
    %v1198 = vpop.permute.xlu0 %1197
    %v1200 = vmul.f32 %v1190, %v1198
    %1202 = vrot.lane.b32.xlu0 %v1200, 32
    %v1203 = vpop.permute.xlu0 %1202
    %v1205 = vadd.f32 %v1195, %v1203
    %v1206 = vtanh.pop %v1205
    %1208 = vrot.lane.b32.xlu0 %v1206, 64
    %v1209 = vpop.permute.xlu0 %1208
    %v1211 = vmul.f32 %v1190, %v1209
    %v1212 = vxor.u32 %v1184, 2147483648
    %v1213 = vmul.f32 %v1212, 1.442695
    %v1214 = vpow.pop %v1213
    %v1215 = vadd.f32 %v1214, 1.0
    %v1216 = vrcp.pop %v1215
    %v1217 = vmul.f32 1.0, %v1216
    %v1218 = vtanh.pop %v1184
    %v1220 = vrot.slane %v1078, 2
    %v1222 = vmul.f32 %v1217, %v1220
    %1224 = vrot.lane.b32.xlu0 %v1218, 64
    %v1225 = vpop.permute.xlu0 %1224
    %v1227 = vmul.f32 %v1217, %v1225
    %1229 = vrot.lane.b32.xlu0 %v1227, 32
    %v1230 = vpop.permute.xlu0 %1229
    %v1232 = vadd.f32 %v1222, %v1230
    %v1233 = vtanh.pop %v1232
    %1235 = vrot.lane.b32.xlu0 %v1233, 64
    %v1236 = vpop.permute.xlu0 %1235
    %v1238 = vmul.f32 %v1217, %v1236
    %1240 = vrot.lane.b32.xlu0 %v1211, 32
    %v1241 = vpop.permute.xlu0 %1240
    %1243 = vst.msk [vmem:[#allocation9 + $0x8] sm:$0x30] %vm630, %v1241
    %1245 = vrot.lane.b32.xlu0 %v1238, 64
    %v1246 = vpop.permute.xlu0 %1245
    %1248 = vst.msk [vmem:[#allocation9] sm:$0xc] %vm636, %v1246
    %v1249 = vrot.slane %v1238, 6
    %1250 = vrot.lane.b32.xlu0 %v1249, 64
    %v1251 = vpop.permute.xlu0 %1250
    %v1253 = vsel %vm81, %v1241, %v1251
    %v1255 = vrot.slane %v1253, 4
    %v1256 = vsel %vm185, %v1255, 0
    %1258 = vmatprep.subr.mxu0 %v170
    %1259 = vmatpush1.msra.mxu0 %v169
    %1260 = vmatprep.subr.mxu0 %v172
    %1261 = vmatpush1.msra.mxu0 %v171
    %1262 = vmatprep.subr.mxu0 %v174
    %1263 = vmatpush1.msra.mxu0 %v173
    %1264 = vmatprep.subr.mxu0 %v176
    %1265 = vmatpush1.msra.mxu0 %v175
    %1266 = vmatprep.subr.mxu0 %v178
    %1267 = vmatpush1.msra.mxu0 %v177
    %1268 = vmatprep.subr.mxu0 %v180
    %1269 = vmatpush1.msra.mxu0 %v179
    %1270 = vmatprep.subr.mxu0 %v182
    %1271 = vmatpush1.msra.mxu0 %v181
    %1272 = vmatprep.subr.mxu0 %v184
    %1273 = vmatpush1.msra.mxu0 %v183
    %1274 = vmatprep.subr.mxu0 0.0
    %1275 = vmatpush1.msra.mxu0 0.0
    %1276 = vmatprep.subr.mxu0 0.0
    %1277 = vmatpush1.msra.mxu0 0.0
    %1278 = vmatprep.subr.mxu0 0.0
    %1279 = vmatpush1.msra.mxu0 0.0
    %1280 = vmatprep.subr.mxu0 0.0
    %1281 = vmatpush1.msra.mxu0 0.0
    %1282 = vmatprep.subr.mxu0 0.0
    %1283 = vmatpush1.msra.mxu0 0.0
    %1284 = vmatprep.subr.mxu0 0.0
    %1285 = vmatpush1.msra.mxu0 0.0
    %1286 = vmatprep.subr.mxu0 0.0
    %1287 = vmatpush1.msra.mxu0 0.0
    %1288 = vmatprep.subr.mxu0 0.0
    %1289 = vmatpush1.msra.mxu0 0.0
    %1290 = vmatprep.subr.mxu0 0.0
    %1291 = vmatpush1.msra.mxu0 0.0
    %1292 = vmatprep.subr.mxu0 0.0
    %1293 = vmatpush1.msra.mxu0 0.0
    %1294 = vmatprep.subr.mxu0 0.0
    %1295 = vmatpush1.msra.mxu0 0.0
    %1296 = vmatprep.subr.mxu0 0.0
    %1297 = vmatpush1.msra.mxu0 0.0
    %1298 = vmatprep.subr.mxu0 0.0
    %1299 = vmatpush1.msra.mxu0 0.0
    %1300 = vmatprep.subr.mxu0 0.0
    %1301 = vmatpush1.msra.mxu0 0.0
    %1302 = vmatprep.subr.mxu0 0.0
    %1303 = vmatpush1.msra.mxu0 0.0
    %1304 = vmatprep.subr.mxu0 0.0
    %1305 = vmatpush1.msra.mxu0 0.0
    %1306 = vmatprep.subr.mxu0 0.0
    %1307 = vmatpush1.msra.mxu0 0.0
    %1308 = vmatprep.subr.mxu0 0.0
    %1309 = vmatpush1.msra.mxu0 0.0
    %1310 = vmatprep.subr.mxu0 0.0
    %1311 = vmatpush1.msra.mxu0 0.0
    %1312 = vmatprep.subr.mxu0 0.0
    %1313 = vmatpush1.msra.mxu0 0.0
    %1314 = vmatprep.subr.mxu0 0.0
    %1315 = vmatpush1.msra.mxu0 0.0
    %1316 = vmatprep.subr.mxu0 0.0
    %1317 = vmatpush1.msra.mxu0 0.0
    %1318 = vmatprep.subr.mxu0 0.0
    %1319 = vmatpush1.msra.mxu0 0.0
    %1320 = vmatprep.subr.mxu0 0.0
    %1321 = vmatpush1.msra.mxu0 0.0
    %1322 = vmatprep.mubr.f32.mxu0 0.0
    %1323 = vmatmul.mubr.f32.gmra.mrb[0].mxu0 %v1256
    %v1324 = vpop.f32.mrb[0].mxu0
    %v1325 = vadd.f32 0.0, %v1324
    %v1326 = vpop.f32.mrb[0].mxu0
    %v1327 = vadd.f32 0.0, %v1326
    %1328 = vdwg.mxu0
    %v1329 = vld [vmem:[#allocation2 + $0x10] sm:$0xc0]
    %v1331 = vrot.slane %v1325, 2
    %v1333 = vadd.f32 %v1329, %v1331
    %v1334 = vld [vmem:[#allocation2 + $0x8] sm:$0x3]
    %v1335 = vadd.f32 %v1334, %v1327
    %v1336 = vxor.u32 %v1333, 2147483648
    %v1337 = vmul.f32 %v1336, 1.442695
    %v1338 = vpow.pop %v1337
    %v1339 = vadd.f32 %v1338, 1.0
    %v1340 = vrcp.pop %v1339
    %v1341 = vmul.f32 1.0, %v1340
    %v1342 = vtanh.pop %v1333
    %v1344 = vrot.slane %v1205, 6
    %v1346 = vmul.f32 %v1341, %v1344
    %1348 = vrot.lane.b32.xlu0 %v1342, 64
    %v1349 = vpop.permute.xlu0 %1348
    %v1351 = vmul.f32 %v1341, %v1349
    %1353 = vrot.lane.b32.xlu0 %v1351, 32
    %v1354 = vpop.permute.xlu0 %1353
    %v1356 = vadd.f32 %v1346, %v1354
    %v1357 = vtanh.pop %v1356
    %1359 = vrot.lane.b32.xlu0 %v1357, 64
    %v1360 = vpop.permute.xlu0 %1359
    %v1362 = vmul.f32 %v1341, %v1360
    %v1363 = vxor.u32 %v1335, 2147483648
    %v1364 = vmul.f32 %v1363, 1.442695
    %v1365 = vpow.pop %v1364
    %v1366 = vadd.f32 %v1365, 1.0
    %v1367 = vrcp.pop %v1366
    %v1368 = vmul.f32 1.0, %v1367
    %v1369 = vtanh.pop %v1335
    %v1371 = vrot.slane %v1232, 2
    %v1373 = vmul.f32 %v1368, %v1371
    %1375 = vrot.lane.b32.xlu0 %v1369, 64
    %v1376 = vpop.permute.xlu0 %1375
    %v1378 = vmul.f32 %v1368, %v1376
    %1380 = vrot.lane.b32.xlu0 %v1378, 32
    %v1381 = vpop.permute.xlu0 %1380
    %v1383 = vadd.f32 %v1373, %v1381
    %v1384 = vtanh.pop %v1383
    %1386 = vrot.lane.b32.xlu0 %v1384, 64
    %v1387 = vpop.permute.xlu0 %1386
    %v1389 = vmul.f32 %v1368, %v1387
    %1391 = vrot.lane.b32.xlu0 %v1362, 32
    %v1392 = vpop.permute.xlu0 %1391
    %1394 = vst.msk [vmem:[#allocation9 + $0x8] sm:$0xc0] %vm783, %v1392
    %1396 = vrot.lane.b32.xlu0 %v1389, 64
    %v1397 = vpop.permute.xlu0 %1396
    %1399 = vst.msk [vmem:[#allocation9] sm:$0x3] %vm789, %v1397
    // Predicated region
    $region30: #{tpu_custom_call.1} parent=1 // pred_check
      _
    $region31: #{tpu_custom_call.1} parent=1 // pred_check_branch
      %1401 = sbr.rel (0) target = $region33
    $region32: #{tpu_custom_call.1} parent=1 // pred_region
      %s1403 = ssub.s32 256, 256
      %1404 = vsyncadd [#allocation5], %s1403
      %s1405 = sshll.u32 [#allocation9], 4
      %s1406 = int_to_ptr.vmem [resolvable:$true] %s1405
      %1411 = dma.vmem_to_hbm [thread:$0]  %s1406, 256, %s4, [#allocation5], 128, 128, 8
    $region33: #{tpu_custom_call.1} parent=1 // pred_fallthru
      _
    // Predicated region
    $region34: #{tpu_custom_call.1} parent=1 // pred_check
      _
    $region35: #{tpu_custom_call.1} parent=1 // pred_check_branch
      %1413 = sbr.rel (0) target = $region37
    $region36: #{tpu_custom_call.1} parent=1 // pred_region
      %1414 = dma.done [#allocation5], 256
    $region37: #{tpu_custom_call.1} parent=1 // pred_fallthru
      _
    %1415 = vsyncpa [#allocation4], 1
    %1416 = vsyncpa [#allocation7], 1
    %1417 = vsyncpa [#allocation5], 1

</llo_original>
